<compile_context>
chip_gen: v5e
topology: v5e:2x2
jax: 0.10.0
libtpu: 0.0.40
codegen_flags: <defaults>
</compile_context>

<pallas_src>
import jax
import jax.numpy as jnp
from jax import lax
from jax.experimental import pallas as pl
from jax.experimental.pallas import tpu as pltpu

# ----- model constants -----
ALPHABET = 4                      # alphabet_size (DNA)
HIDDEN = 32                       # args.hidden_dim (d_model)
NHEAD = 4
HEAD_DIM = HIDDEN // NHEAD
FF_DIM = HIDDEN                   # dim_feedforward = args.hidden_dim
NUM_LAYERS = 2                    # args.num_layers (small example)
LN_EPS = 1e-5                     # PyTorch LayerNorm default
SEQ_LEN = 16
NUM_CLS = 8                       # unused (classifier=False)

# ----- packing layout -----
WSEG = 128                        # lane-aligned segment width inside the weight blob
VEC_ROWS = 10                     # [bq, bk, bv, bo, b1, b2, ln1g, ln1b, ln2g, ln2b]
TAIL_ROWS = 2 * ALPHABET + 3      # emb(A) | lnf_g | lnf_b | out_b(padded) | out_w(A)
TB_MAX = 512                      # batch rows per grid step (VMEM-safe on v5e/v6e/v7x)

assert FF_DIM == HIDDEN and 3 * HIDDEN <= WSEG and HIDDEN % NHEAD == 0
assert SEQ_LEN % 8 == 0


def _layer_norm(y, g, b):
    m = jnp.mean(y, axis=-1, keepdims=True)
    c = y - m
    v = jnp.mean(c * c, axis=-1, keepdims=True)
    return c * lax.rsqrt(v + LN_EPS) * g + b


# ------------------------ fused transformer encoder kernel ------------------------
def _make_kernel(tb):
    L, H, HD, NH, A = SEQ_LEN, HIDDEN, HEAD_DIM, NHEAD, ALPHABET
    tbl = tb * L
    scale = 1.0 / float(HD) ** 0.5

    def split_heads(z):
        # (tbl, H) -> (NH*tb, L, HD), head-major batch.  Only lane slices,
        # tile-preserving sublane splits and leading-dim concat/merge.
        zs = [z[:, h * HD:(h + 1) * HD].reshape(1, tb, L, HD) for h in range(NH)]
        return jnp.concatenate(zs, axis=0).reshape(NH * tb, L, HD)

    def kernel(seq_ref, vec_ref, w_ref, tail_ref, o_ref):
        # ---- fused nn.Embedding: one_hot(ids) @ emb on the MXU ----
        ids = seq_ref[...]                                                   # (tbl, 1) int32
        onehot = (ids == lax.broadcasted_iota(jnp.int32, (tbl, A), 1)
                  ).astype(jnp.float32)                                      # (tbl, A)
        x = jnp.dot(onehot, tail_ref[0:A, :],
                    preferred_element_type=jnp.float32)                      # (tbl, H)

        for l in range(NUM_LAYERS):                                          # static unroll
            wl = w_ref[l]                                                    # (H, 4*WSEG)
            vl = vec_ref[l]                                                  # (VEC_ROWS, H)

            # ---- multi-head self-attention (post-norm), batched over tb*NH ----
            qkv = jnp.dot(x, wl[:, 0:3 * H], preferred_element_type=jnp.float32)
            q = split_heads(qkv[:, 0:H] + vl[0:1, :])
            k = split_heads(qkv[:, H:2 * H] + vl[1:2, :])
            v = split_heads(qkv[:, 2 * H:3 * H] + vl[2:3, :])
            s = lax.dot_general(q, k, (((2,), (2,)), ((0,), (0,))),
                                preferred_element_type=jnp.float32) * scale  # (NH*tb, L, L)
            s = s - jnp.max(s, axis=-1, keepdims=True)
            p = jnp.exp(s)
            p = p * pl.reciprocal(jnp.sum(p, axis=-1, keepdims=True), approx=True)
            ctx = lax.dot_general(p, v, (((2,), (1,)), ((0,), (0,))),
                                  preferred_element_type=jnp.float32)        # (NH*tb, L, HD)

            # Fold heads straight into the output projection (no lane concat):
            #   attn = sum_h ctx_h @ Wo[h*HD:(h+1)*HD, :]
            ctx = ctx.reshape(NH, tbl, HD)
            wo_h = jnp.stack([wl[h * HD:(h + 1) * HD, WSEG:WSEG + H]
                              for h in range(NH)], axis=0)                   # (NH, HD, H)
            proj = lax.dot_general(ctx, wo_h, (((2,), (1,)), ((0,), (0,))),
                                   preferred_element_type=jnp.float32)       # (NH, tbl, H)
            attn = jnp.sum(proj, axis=0) + vl[3:4, :]
            x = _layer_norm(x + attn, vl[6:7, :], vl[7:8, :])

            # ---- feed-forward: linear1 -> ReLU -> linear2 ----
            h1 = jnp.dot(x, wl[:, 2 * WSEG:2 * WSEG + FF_DIM],
                         preferred_element_type=jnp.float32) + vl[4:5, :]
            h1 = jnp.maximum(h1, 0.0)
            ff = jnp.dot(h1, wl[0:FF_DIM, 3 * WSEG:3 * WSEG + H],
                         preferred_element_type=jnp.float32) + vl[5:6, :]
            x = _layer_norm(x + ff, vl[8:9, :], vl[9:10, :])

        # ---- final encoder LayerNorm + out Linear(H, alphabet) ----
        x = _layer_norm(x, tail_ref[A:A + 1, :], tail_ref[A + 1:A + 2, :])
        logits = lax.dot_general(x, tail_ref[A + 3:A + 3 + A, :],
                                 (((1,), (1,)), ((), ())),
                                 preferred_element_type=jnp.float32)         # (tbl, A)
        o_ref[...] = logits + tail_ref[A + 2:A + 3, 0:A]

    return kernel


def _choose_grid(batch):
    # >=2 grid steps (v7x has 2 TensorCores), TB capped so per-step intermediates
    # stay well under the 32 MiB scoped-VMEM default on every generation.
    steps = min(batch, max(2, -(-batch // TB_MAX)))
    tb = -(-batch // steps)
    steps = -(-batch // tb)
    return tb, steps


def transformer_forward(params, seq, t=None, cls=None):
    """clean_data=True path: embedder = nn.Embedding; `t` / `cls` are unused."""
    B, L = seq.shape
    assert L == SEQ_LEN
    tb, steps = _choose_grid(B)
    bp = tb * steps
    if bp != B:
        seq = jnp.pad(seq, ((0, bp - B), (0, 0)))
    tbl = tb * L

    out = pl.pallas_call(
        _make_kernel(tb),
        out_shape=jax.ShapeDtypeStruct((bp * L, ALPHABET), jnp.float32),
        grid_spec=pltpu.PrefetchScalarGridSpec(
            num_scalar_prefetch=0,
            grid=(steps,),
            in_specs=[
                pl.BlockSpec((tbl, 1), lambda i: (i, 0)),                      # token ids
                pl.BlockSpec((NUM_LAYERS, VEC_ROWS, HIDDEN), lambda i: (0, 0, 0)),
                pl.BlockSpec((NUM_LAYERS, HIDDEN, 4 * WSEG), lambda i: (0, 0, 0)),
                pl.BlockSpec((TAIL_ROWS, HIDDEN), lambda i: (0, 0)),
            ],
            out_specs=pl.BlockSpec((tbl, ALPHABET), lambda i: (i, 0)),
        ),
        compiler_params=pltpu.CompilerParams(
            dimension_semantics=("parallel",)),           # batch tiles shard across TCs
    )(seq.reshape(bp * L, 1).astype(jnp.int32),
      params["vec"], params["wblob"], params["tail"])
    return out.reshape(bp, L, ALPHABET)[:B]


# ------------------------------- parameters -------------------------------
def init_params(key):
    ks = jax.random.split(key, NUM_LAYERS + 3)

    def n(k, shape, scale=0.05):
        return (scale * jax.random.normal(k, shape)).astype(jnp.float32)

    emb = n(ks[0], (ALPHABET, HIDDEN), 0.1)                  # nn.Embedding.weight

    w_layers, v_layers = [], []
    for l in range(NUM_LAYERS):
        lk = jax.random.split(ks[1 + l], 8)
        in_proj_w = n(lk[0], (3 * HIDDEN, HIDDEN))           # MHA in_proj_weight [q;k;v]
        in_proj_b = n(lk[1], (3 * HIDDEN,))
        out_proj_w = n(lk[2], (HIDDEN, HIDDEN))
        out_proj_b = n(lk[3], (HIDDEN,))
        lin1_w = n(lk[4], (FF_DIM, HIDDEN)); lin1_b = n(lk[5], (FF_DIM,))
        lin2_w = n(lk[6], (HIDDEN, FF_DIM)); lin2_b = n(lk[7], (HIDDEN,))

        def seg(w_t):                                        # (H, c) -> (H, WSEG)
            return jnp.pad(w_t, ((0, 0), (0, WSEG - w_t.shape[1])))

        # lane-aligned weight blob: [Wqkv | Wo | W1 | W2], each at a 128-lane boundary
        w_layers.append(jnp.concatenate(
            [seg(in_proj_w.T), seg(out_proj_w.T), seg(lin1_w.T), seg(lin2_w.T)], axis=1))
        v_layers.append(jnp.stack(
            [in_proj_b[0:HIDDEN], in_proj_b[HIDDEN:2 * HIDDEN], in_proj_b[2 * HIDDEN:],
             out_proj_b, lin1_b, lin2_b,
             jnp.ones((HIDDEN,), jnp.float32), jnp.zeros((HIDDEN,), jnp.float32),   # norm1
             jnp.ones((HIDDEN,), jnp.float32), jnp.zeros((HIDDEN,), jnp.float32)],  # norm2
            axis=0))

    out_w = n(ks[-2], (ALPHABET, HIDDEN))                    # self.out.weight (A, H)
    out_b = n(ks[-1], (ALPHABET,), 0.02)
    tail = jnp.concatenate(
        [emb,
         jnp.ones((1, HIDDEN), jnp.float32),                 # final encoder LN gamma
         jnp.zeros((1, HIDDEN), jnp.float32),                # final encoder LN beta
         jnp.pad(out_b, (0, HIDDEN - ALPHABET))[None, :],    # out bias (padded to H)
         out_w], axis=0)

    return {"wblob": jnp.stack(w_layers),                    # (NL, H, 4*WSEG)
            "vec": jnp.stack(v_layers),                      # (NL, 10, H)
            "tail": tail}                                    # (2A+3, H)


# --------------------------- pure-JAX reference ---------------------------
def _ref_forward(params, seq):
    vec, wb, tail = params["vec"], params["wblob"], params["tail"]
    B, L = seq.shape
    x = tail[0:ALPHABET][seq].reshape(B * L, HIDDEN)
    for l in range(NUM_LAYERS):
        wl, vl = wb[l], vec[l]
        qkv = x @ wl[:, 0:3 * HIDDEN]
        q = (qkv[:, 0:HIDDEN] + vl[0]).reshape(B, L, NHEAD, HEAD_DIM)
        k = (qkv[:, HIDDEN:2 * HIDDEN] + vl[1]).reshape(B, L, NHEAD, HEAD_DIM)
        v = (qkv[:, 2 * HIDDEN:3 * HIDDEN] + vl[2]).reshape(B, L, NHEAD, HEAD_DIM)
        s = jnp.einsum("bihd,bjhd->bhij", q, k) / float(HEAD_DIM) ** 0.5
        p = jax.nn.softmax(s, axis=-1)
        ctx = jnp.einsum("bhij,bjhd->bihd", p, v).reshape(B * L, HIDDEN)
        attn = ctx @ wl[:, WSEG:WSEG + HIDDEN] + vl[3]
        x = _layer_norm(x + attn, vl[6], vl[7])
        h1 = jnp.maximum(x @ wl[:, 2 * WSEG:2 * WSEG + FF_DIM] + vl[4], 0.0)
        ff = h1 @ wl[0:FF_DIM, 3 * WSEG:3 * WSEG + HIDDEN] + vl[5]
        x = _layer_norm(x + ff, vl[8], vl[9])
    x = _layer_norm(x, tail[ALPHABET], tail[ALPHABET + 1])
    logits = x @ tail[ALPHABET + 3:ALPHABET + 3 + ALPHABET].T + tail[ALPHABET + 2, 0:ALPHABET]
    return logits.reshape(B, L, ALPHABET)


if __name__ == "__main__":
    key = jax.random.PRNGKey(0)
    pkey, skey = jax.random.split(key)
    params = init_params(pkey)

    B = 2
    seq = jax.random.randint(skey, (B, SEQ_LEN), 0, ALPHABET, dtype=jnp.int32)
    t = jnp.zeros((B,), jnp.float32)    # present in the signature, unused (clean_data=True)

    out = jax.jit(transformer_forward)(params, seq, t)
    out = jax.block_until_ready(out)

    assert out.shape == (B, SEQ_LEN, ALPHABET), out.shape
    assert bool(jnp.all(jnp.isfinite(out)))
    ref = _ref_forward(params, seq)
    assert bool(jnp.allclose(out, ref, atol=5e-2, rtol=5e-2)), \
        float(jnp.max(jnp.abs(out - ref)))
    print("KERNEL_OK")
</pallas_src>

<mosaic_0001>
module attributes {stable_mosaic.version = 11 : i64} {
  func.func @kernel(%arg0: i32, %arg1: memref<16x1xi32, #tpu.memory_space<vmem>>, %arg2: memref<2x10x32xf32, #tpu.memory_space<vmem>>, %arg3: memref<2x32x512xf32, #tpu.memory_space<vmem>>, %arg4: memref<11x32xf32, #tpu.memory_space<vmem>>, %arg5: memref<16x4xf32, #tpu.memory_space<vmem>>) attributes {dimension_semantics = [#tpu.dimension_semantics<parallel>], iteration_bounds = array<i64: 2>, scalar_prefetch = 0 : i64, scratch_operands = 0 : i64, tpu.core_type = #tpu.core_type<tc>, window_params = [{transform_indices = @transform_0, window_bounds = array<i64: 16, 1>}, {pipeline_mode = #tpu.pipeline_mode<synchronous>, transform_indices = @transform_1, window_bounds = array<i64: 2, 10, 32>}, {pipeline_mode = #tpu.pipeline_mode<synchronous>, transform_indices = @transform_2, window_bounds = array<i64: 2, 32, 512>}, {pipeline_mode = #tpu.pipeline_mode<synchronous>, transform_indices = @transform_3, window_bounds = array<i64: 11, 32>}, {transform_indices = @transform_4, window_bounds = array<i64: 16, 4>}]} {
    %c0 = arith.constant 0 : index
    %c0_0 = arith.constant 0 : index
    %0 = vector.load %arg1[%c0, %c0_0] : memref<16x1xi32, #tpu.memory_space<vmem>>, vector<16x1xi32>
    %1 = tpu.iota {dimensions = array<i32: 1>} : vector<16x4xi32>
    %2 = vector.broadcast %0 : vector<16x1xi32> to vector<16x4xi32>
    %3 = arith.cmpi eq, %2, %1 : vector<16x4xi32>
    %4 = arith.extui %3 : vector<16x4xi1> to vector<16x4xi32>
    %5 = arith.sitofp %4 : vector<16x4xi32> to vector<16x4xf32>
    %c0_1 = arith.constant 0 : index
    %c0_2 = arith.constant 0 : index
    %6 = vector.load %arg4[%c0_1, %c0_2] : memref<11x32xf32, #tpu.memory_space<vmem>>, vector<4x32xf32>
    %cst = arith.constant dense<0.000000e+00> : vector<16x32xf32>
    %7 = tpu.matmul %5, %6, %cst {dimension_numbers = #tpu.dot_dimension_numbers<[1], [0], [0], [1], [0, 0, 1, 1], [], []>} : vector<16x4xf32>, vector<4x32xf32>, vector<16x32xf32> -> vector<16x32xf32>
    %c0_3 = arith.constant 0 : index
    %c0_4 = arith.constant 0 : index
    %c0_5 = arith.constant 0 : index
    %8 = vector.load %arg3[%c0_3, %c0_4, %c0_5] : memref<2x32x512xf32, #tpu.memory_space<vmem>>, vector<1x32x512xf32>
    %9 = vector.shape_cast %8 : vector<1x32x512xf32> to vector<32x512xf32>
    %c0_6 = arith.constant 0 : index
    %c0_7 = arith.constant 0 : index
    %c0_8 = arith.constant 0 : index
    %10 = vector.load %arg2[%c0_6, %c0_7, %c0_8] : memref<2x10x32xf32, #tpu.memory_space<vmem>>, vector<1x10x32xf32>
    %11 = vector.shape_cast %10 : vector<1x10x32xf32> to vector<10x32xf32>
    %12 = vector.extract_strided_slice %9 {offsets = [0, 0], sizes = [32, 96], strides = [1, 1]} : vector<32x512xf32> to vector<32x96xf32>
    %cst_9 = arith.constant dense<0.000000e+00> : vector<16x96xf32>
    %13 = tpu.matmul %7, %12, %cst_9 {dimension_numbers = #tpu.dot_dimension_numbers<[1], [0], [0], [1], [0, 0, 1, 1], [], []>} : vector<16x32xf32>, vector<32x96xf32>, vector<16x96xf32> -> vector<16x96xf32>
    %14 = vector.extract_strided_slice %13 {offsets = [0, 0], sizes = [16, 32], strides = [1, 1]} : vector<16x96xf32> to vector<16x32xf32>
    %15 = vector.extract_strided_slice %11 {offsets = [0, 0], sizes = [1, 32], strides = [1, 1]} : vector<10x32xf32> to vector<1x32xf32>
    %16 = vector.broadcast %15 : vector<1x32xf32> to vector<16x32xf32>
    %17 = arith.addf %14, %16 : vector<16x32xf32>
    %18 = vector.extract_strided_slice %17 {offsets = [0, 0], sizes = [16, 8], strides = [1, 1]} : vector<16x32xf32> to vector<16x8xf32>
    %19 = vector.shape_cast %18 : vector<16x8xf32> to vector<1x1x16x8xf32>
    %20 = vector.extract_strided_slice %17 {offsets = [0, 8], sizes = [16, 8], strides = [1, 1]} : vector<16x32xf32> to vector<16x8xf32>
    %21 = vector.shape_cast %20 : vector<16x8xf32> to vector<1x1x16x8xf32>
    %22 = vector.extract_strided_slice %17 {offsets = [0, 16], sizes = [16, 8], strides = [1, 1]} : vector<16x32xf32> to vector<16x8xf32>
    %23 = vector.shape_cast %22 : vector<16x8xf32> to vector<1x1x16x8xf32>
    %24 = vector.extract_strided_slice %17 {offsets = [0, 24], sizes = [16, 8], strides = [1, 1]} : vector<16x32xf32> to vector<16x8xf32>
    %25 = vector.shape_cast %24 : vector<16x8xf32> to vector<1x1x16x8xf32>
    %26 = tpu.concatenate %19, %21, %23, %25 in 0 : vector<1x1x16x8xf32>, vector<1x1x16x8xf32>, vector<1x1x16x8xf32>, vector<1x1x16x8xf32> -> vector<4x1x16x8xf32>
    %27 = vector.shape_cast %26 : vector<4x1x16x8xf32> to vector<4x16x8xf32>
    %28 = vector.extract_strided_slice %13 {offsets = [0, 32], sizes = [16, 32], strides = [1, 1]} : vector<16x96xf32> to vector<16x32xf32>
    %29 = vector.extract_strided_slice %11 {offsets = [1, 0], sizes = [1, 32], strides = [1, 1]} : vector<10x32xf32> to vector<1x32xf32>
    %30 = vector.broadcast %29 : vector<1x32xf32> to vector<16x32xf32>
    %31 = arith.addf %28, %30 : vector<16x32xf32>
    %32 = vector.extract_strided_slice %31 {offsets = [0, 0], sizes = [16, 8], strides = [1, 1]} : vector<16x32xf32> to vector<16x8xf32>
    %33 = vector.shape_cast %32 : vector<16x8xf32> to vector<1x1x16x8xf32>
    %34 = vector.extract_strided_slice %31 {offsets = [0, 8], sizes = [16, 8], strides = [1, 1]} : vector<16x32xf32> to vector<16x8xf32>
    %35 = vector.shape_cast %34 : vector<16x8xf32> to vector<1x1x16x8xf32>
    %36 = vector.extract_strided_slice %31 {offsets = [0, 16], sizes = [16, 8], strides = [1, 1]} : vector<16x32xf32> to vector<16x8xf32>
    %37 = vector.shape_cast %36 : vector<16x8xf32> to vector<1x1x16x8xf32>
    %38 = vector.extract_strided_slice %31 {offsets = [0, 24], sizes = [16, 8], strides = [1, 1]} : vector<16x32xf32> to vector<16x8xf32>
    %39 = vector.shape_cast %38 : vector<16x8xf32> to vector<1x1x16x8xf32>
    %40 = tpu.concatenate %33, %35, %37, %39 in 0 : vector<1x1x16x8xf32>, vector<1x1x16x8xf32>, vector<1x1x16x8xf32>, vector<1x1x16x8xf32> -> vector<4x1x16x8xf32>
    %41 = vector.shape_cast %40 : vector<4x1x16x8xf32> to vector<4x16x8xf32>
    %42 = vector.extract_strided_slice %13 {offsets = [0, 64], sizes = [16, 32], strides = [1, 1]} : vector<16x96xf32> to vector<16x32xf32>
    %43 = vector.extract_strided_slice %11 {offsets = [2, 0], sizes = [1, 32], strides = [1, 1]} : vector<10x32xf32> to vector<1x32xf32>
    %44 = vector.broadcast %43 : vector<1x32xf32> to vector<16x32xf32>
    %45 = arith.addf %42, %44 : vector<16x32xf32>
    %46 = vector.extract_strided_slice %45 {offsets = [0, 0], sizes = [16, 8], strides = [1, 1]} : vector<16x32xf32> to vector<16x8xf32>
    %47 = vector.shape_cast %46 : vector<16x8xf32> to vector<1x1x16x8xf32>
    %48 = vector.extract_strided_slice %45 {offsets = [0, 8], sizes = [16, 8], strides = [1, 1]} : vector<16x32xf32> to vector<16x8xf32>
    %49 = vector.shape_cast %48 : vector<16x8xf32> to vector<1x1x16x8xf32>
    %50 = vector.extract_strided_slice %45 {offsets = [0, 16], sizes = [16, 8], strides = [1, 1]} : vector<16x32xf32> to vector<16x8xf32>
    %51 = vector.shape_cast %50 : vector<16x8xf32> to vector<1x1x16x8xf32>
    %52 = vector.extract_strided_slice %45 {offsets = [0, 24], sizes = [16, 8], strides = [1, 1]} : vector<16x32xf32> to vector<16x8xf32>
    %53 = vector.shape_cast %52 : vector<16x8xf32> to vector<1x1x16x8xf32>
    %54 = tpu.concatenate %47, %49, %51, %53 in 0 : vector<1x1x16x8xf32>, vector<1x1x16x8xf32>, vector<1x1x16x8xf32>, vector<1x1x16x8xf32> -> vector<4x1x16x8xf32>
    %55 = vector.shape_cast %54 : vector<4x1x16x8xf32> to vector<4x16x8xf32>
    %cst_10 = arith.constant dense<0.000000e+00> : vector<4x16x16xf32>
    %56 = tpu.matmul %27, %41, %cst_10 {dimension_numbers = #tpu.dot_dimension_numbers<[2], [2], [1], [1], [0, 0, 0, 1, 1, 1], [0], [0]>} : vector<4x16x8xf32>, vector<4x16x8xf32>, vector<4x16x16xf32> -> vector<4x16x16xf32>
    %cst_11 = arith.constant 0.353553385 : f32
    %57 = vector.broadcast %cst_11 : f32 to vector<4x16x16xf32>
    %58 = arith.mulf %56, %57 : vector<4x16x16xf32>
    %cst_12 = arith.constant dense<0xFF800000> : vector<4x16xf32>
    %59 = vector.multi_reduction <maximumf>, %58, %cst_12 [2] : vector<4x16x16xf32> to vector<4x16xf32>
    %60 = vector.shape_cast %59 : vector<4x16xf32> to vector<4x16x1xf32>
    %61 = vector.broadcast %60 : vector<4x16x1xf32> to vector<4x16x16xf32>
    %62 = arith.subf %58, %61 : vector<4x16x16xf32>
    %63 = math.exp %62 : vector<4x16x16xf32>
    %cst_13 = arith.constant dense<0.000000e+00> : vector<4x16xf32>
    %64 = vector.multi_reduction <add>, %63, %cst_13 [2] : vector<4x16x16xf32> to vector<4x16xf32>
    %65 = vector.shape_cast %64 : vector<4x16xf32> to vector<4x16x1xf32>
    %66 = tpu.reciprocal %65 {approx = true} : vector<4x16x1xf32> -> vector<4x16x1xf32>
    %67 = vector.broadcast %66 : vector<4x16x1xf32> to vector<4x16x16xf32>
    %68 = arith.mulf %63, %67 : vector<4x16x16xf32>
    %cst_14 = arith.constant dense<0.000000e+00> : vector<4x16x8xf32>
    %69 = tpu.matmul %68, %55, %cst_14 {dimension_numbers = #tpu.dot_dimension_numbers<[2], [1], [1], [2], [0, 0, 0, 1, 1, 2], [0], [0]>} : vector<4x16x16xf32>, vector<4x16x8xf32>, vector<4x16x8xf32> -> vector<4x16x8xf32>
    %70 = vector.extract_strided_slice %9 {offsets = [0, 128], sizes = [8, 32], strides = [1, 1]} : vector<32x512xf32> to vector<8x32xf32>
    %71 = vector.extract_strided_slice %9 {offsets = [8, 128], sizes = [8, 32], strides = [1, 1]} : vector<32x512xf32> to vector<8x32xf32>
    %72 = vector.extract_strided_slice %9 {offsets = [16, 128], sizes = [8, 32], strides = [1, 1]} : vector<32x512xf32> to vector<8x32xf32>
    %73 = vector.extract_strided_slice %9 {offsets = [24, 128], sizes = [8, 32], strides = [1, 1]} : vector<32x512xf32> to vector<8x32xf32>
    %74 = vector.shape_cast %70 : vector<8x32xf32> to vector<1x8x32xf32>
    %75 = vector.shape_cast %71 : vector<8x32xf32> to vector<1x8x32xf32>
    %76 = vector.shape_cast %72 : vector<8x32xf32> to vector<1x8x32xf32>
    %77 = vector.shape_cast %73 : vector<8x32xf32> to vector<1x8x32xf32>
    %78 = tpu.concatenate %74, %75, %76, %77 in 0 : vector<1x8x32xf32>, vector<1x8x32xf32>, vector<1x8x32xf32>, vector<1x8x32xf32> -> vector<4x8x32xf32>
    %cst_15 = arith.constant dense<0.000000e+00> : vector<4x16x32xf32>
    %79 = tpu.matmul %69, %78, %cst_15 {dimension_numbers = #tpu.dot_dimension_numbers<[2], [1], [1], [2], [0, 0, 0, 1, 1, 2], [0], [0]>} : vector<4x16x8xf32>, vector<4x8x32xf32>, vector<4x16x32xf32> -> vector<4x16x32xf32>
    %cst_16 = arith.constant dense<0.000000e+00> : vector<16x32xf32>
    %80 = vector.multi_reduction <add>, %79, %cst_16 [0] : vector<4x16x32xf32> to vector<16x32xf32>
    %81 = vector.extract_strided_slice %11 {offsets = [3, 0], sizes = [1, 32], strides = [1, 1]} : vector<10x32xf32> to vector<1x32xf32>
    %82 = vector.broadcast %81 : vector<1x32xf32> to vector<16x32xf32>
    %83 = arith.addf %80, %82 : vector<16x32xf32>
    %84 = arith.addf %7, %83 : vector<16x32xf32>
    %85 = vector.extract_strided_slice %11 {offsets = [6, 0], sizes = [1, 32], strides = [1, 1]} : vector<10x32xf32> to vector<1x32xf32>
    %86 = vector.extract_strided_slice %11 {offsets = [7, 0], sizes = [1, 32], strides = [1, 1]} : vector<10x32xf32> to vector<1x32xf32>
    %cst_17 = arith.constant dense<0.000000e+00> : vector<16xf32>
    %87 = vector.multi_reduction <add>, %84, %cst_17 [1] : vector<16x32xf32> to vector<16xf32>
    %88 = vector.shape_cast %87 : vector<16xf32> to vector<16x1xf32>
    %cst_18 = arith.constant 3.200000e+01 : f32
    %89 = vector.broadcast %cst_18 : f32 to vector<16x1xf32>
    %90 = arith.divf %88, %89 : vector<16x1xf32>
    %91 = vector.broadcast %90 : vector<16x1xf32> to vector<16x32xf32>
    %92 = arith.subf %84, %91 : vector<16x32xf32>
    %93 = arith.mulf %92, %92 : vector<16x32xf32>
    %cst_19 = arith.constant dense<0.000000e+00> : vector<16xf32>
    %94 = vector.multi_reduction <add>, %93, %cst_19 [1] : vector<16x32xf32> to vector<16xf32>
    %95 = vector.shape_cast %94 : vector<16xf32> to vector<16x1xf32>
    %cst_20 = arith.constant 3.200000e+01 : f32
    %96 = vector.broadcast %cst_20 : f32 to vector<16x1xf32>
    %97 = arith.divf %95, %96 : vector<16x1xf32>
    %cst_21 = arith.constant 9.99999974E-6 : f32
    %98 = vector.broadcast %cst_21 : f32 to vector<16x1xf32>
    %99 = arith.addf %97, %98 : vector<16x1xf32>
    %100 = math.rsqrt %99 : vector<16x1xf32>
    %101 = vector.broadcast %100 : vector<16x1xf32> to vector<16x32xf32>
    %102 = arith.mulf %92, %101 : vector<16x32xf32>
    %103 = vector.broadcast %85 : vector<1x32xf32> to vector<16x32xf32>
    %104 = arith.mulf %102, %103 : vector<16x32xf32>
    %105 = vector.broadcast %86 : vector<1x32xf32> to vector<16x32xf32>
    %106 = arith.addf %104, %105 : vector<16x32xf32>
    %107 = vector.extract_strided_slice %9 {offsets = [0, 256], sizes = [32, 32], strides = [1, 1]} : vector<32x512xf32> to vector<32x32xf32>
    %cst_22 = arith.constant dense<0.000000e+00> : vector<16x32xf32>
    %108 = tpu.matmul %106, %107, %cst_22 {dimension_numbers = #tpu.dot_dimension_numbers<[1], [0], [0], [1], [0, 0, 1, 1], [], []>} : vector<16x32xf32>, vector<32x32xf32>, vector<16x32xf32> -> vector<16x32xf32>
    %109 = vector.extract_strided_slice %11 {offsets = [4, 0], sizes = [1, 32], strides = [1, 1]} : vector<10x32xf32> to vector<1x32xf32>
    %110 = vector.broadcast %109 : vector<1x32xf32> to vector<16x32xf32>
    %111 = arith.addf %108, %110 : vector<16x32xf32>
    %cst_23 = arith.constant 0.000000e+00 : f32
    %112 = vector.broadcast %cst_23 : f32 to vector<16x32xf32>
    %113 = arith.maximumf %111, %112 : vector<16x32xf32>
    %114 = vector.extract_strided_slice %9 {offsets = [0, 384], sizes = [32, 32], strides = [1, 1]} : vector<32x512xf32> to vector<32x32xf32>
    %cst_24 = arith.constant dense<0.000000e+00> : vector<16x32xf32>
    %115 = tpu.matmul %113, %114, %cst_24 {dimension_numbers = #tpu.dot_dimension_numbers<[1], [0], [0], [1], [0, 0, 1, 1], [], []>} : vector<16x32xf32>, vector<32x32xf32>, vector<16x32xf32> -> vector<16x32xf32>
    %116 = vector.extract_strided_slice %11 {offsets = [5, 0], sizes = [1, 32], strides = [1, 1]} : vector<10x32xf32> to vector<1x32xf32>
    %117 = vector.broadcast %116 : vector<1x32xf32> to vector<16x32xf32>
    %118 = arith.addf %115, %117 : vector<16x32xf32>
    %119 = arith.addf %106, %118 : vector<16x32xf32>
    %120 = vector.extract_strided_slice %11 {offsets = [8, 0], sizes = [1, 32], strides = [1, 1]} : vector<10x32xf32> to vector<1x32xf32>
    %121 = vector.extract_strided_slice %11 {offsets = [9, 0], sizes = [1, 32], strides = [1, 1]} : vector<10x32xf32> to vector<1x32xf32>
    %cst_25 = arith.constant dense<0.000000e+00> : vector<16xf32>
    %122 = vector.multi_reduction <add>, %119, %cst_25 [1] : vector<16x32xf32> to vector<16xf32>
    %123 = vector.shape_cast %122 : vector<16xf32> to vector<16x1xf32>
    %cst_26 = arith.constant 3.200000e+01 : f32
    %124 = vector.broadcast %cst_26 : f32 to vector<16x1xf32>
    %125 = arith.divf %123, %124 : vector<16x1xf32>
    %126 = vector.broadcast %125 : vector<16x1xf32> to vector<16x32xf32>
    %127 = arith.subf %119, %126 : vector<16x32xf32>
    %128 = arith.mulf %127, %127 : vector<16x32xf32>
    %cst_27 = arith.constant dense<0.000000e+00> : vector<16xf32>
    %129 = vector.multi_reduction <add>, %128, %cst_27 [1] : vector<16x32xf32> to vector<16xf32>
    %130 = vector.shape_cast %129 : vector<16xf32> to vector<16x1xf32>
    %cst_28 = arith.constant 3.200000e+01 : f32
    %131 = vector.broadcast %cst_28 : f32 to vector<16x1xf32>
    %132 = arith.divf %130, %131 : vector<16x1xf32>
    %cst_29 = arith.constant 9.99999974E-6 : f32
    %133 = vector.broadcast %cst_29 : f32 to vector<16x1xf32>
    %134 = arith.addf %132, %133 : vector<16x1xf32>
    %135 = math.rsqrt %134 : vector<16x1xf32>
    %136 = vector.broadcast %135 : vector<16x1xf32> to vector<16x32xf32>
    %137 = arith.mulf %127, %136 : vector<16x32xf32>
    %138 = vector.broadcast %120 : vector<1x32xf32> to vector<16x32xf32>
    %139 = arith.mulf %137, %138 : vector<16x32xf32>
    %140 = vector.broadcast %121 : vector<1x32xf32> to vector<16x32xf32>
    %141 = arith.addf %139, %140 : vector<16x32xf32>
    %c1 = arith.constant 1 : index
    %c0_30 = arith.constant 0 : index
    %c0_31 = arith.constant 0 : index
    %142 = vector.load %arg3[%c1, %c0_30, %c0_31] : memref<2x32x512xf32, #tpu.memory_space<vmem>>, vector<1x32x512xf32>
    %143 = vector.shape_cast %142 : vector<1x32x512xf32> to vector<32x512xf32>
    %c1_32 = arith.constant 1 : index
    %c0_33 = arith.constant 0 : index
    %c0_34 = arith.constant 0 : index
    %144 = vector.load %arg2[%c1_32, %c0_33, %c0_34] : memref<2x10x32xf32, #tpu.memory_space<vmem>>, vector<1x10x32xf32>
    %145 = vector.shape_cast %144 : vector<1x10x32xf32> to vector<10x32xf32>
    %146 = vector.extract_strided_slice %143 {offsets = [0, 0], sizes = [32, 96], strides = [1, 1]} : vector<32x512xf32> to vector<32x96xf32>
    %cst_35 = arith.constant dense<0.000000e+00> : vector<16x96xf32>
    %147 = tpu.matmul %141, %146, %cst_35 {dimension_numbers = #tpu.dot_dimension_numbers<[1], [0], [0], [1], [0, 0, 1, 1], [], []>} : vector<16x32xf32>, vector<32x96xf32>, vector<16x96xf32> -> vector<16x96xf32>
    %148 = vector.extract_strided_slice %147 {offsets = [0, 0], sizes = [16, 32], strides = [1, 1]} : vector<16x96xf32> to vector<16x32xf32>
    %149 = vector.extract_strided_slice %145 {offsets = [0, 0], sizes = [1, 32], strides = [1, 1]} : vector<10x32xf32> to vector<1x32xf32>
    %150 = vector.broadcast %149 : vector<1x32xf32> to vector<16x32xf32>
    %151 = arith.addf %148, %150 : vector<16x32xf32>
    %152 = vector.extract_strided_slice %151 {offsets = [0, 0], sizes = [16, 8], strides = [1, 1]} : vector<16x32xf32> to vector<16x8xf32>
    %153 = vector.shape_cast %152 : vector<16x8xf32> to vector<1x1x16x8xf32>
    %154 = vector.extract_strided_slice %151 {offsets = [0, 8], sizes = [16, 8], strides = [1, 1]} : vector<16x32xf32> to vector<16x8xf32>
    %155 = vector.shape_cast %154 : vector<16x8xf32> to vector<1x1x16x8xf32>
    %156 = vector.extract_strided_slice %151 {offsets = [0, 16], sizes = [16, 8], strides = [1, 1]} : vector<16x32xf32> to vector<16x8xf32>
    %157 = vector.shape_cast %156 : vector<16x8xf32> to vector<1x1x16x8xf32>
    %158 = vector.extract_strided_slice %151 {offsets = [0, 24], sizes = [16, 8], strides = [1, 1]} : vector<16x32xf32> to vector<16x8xf32>
    %159 = vector.shape_cast %158 : vector<16x8xf32> to vector<1x1x16x8xf32>
    %160 = tpu.concatenate %153, %155, %157, %159 in 0 : vector<1x1x16x8xf32>, vector<1x1x16x8xf32>, vector<1x1x16x8xf32>, vector<1x1x16x8xf32> -> vector<4x1x16x8xf32>
    %161 = vector.shape_cast %160 : vector<4x1x16x8xf32> to vector<4x16x8xf32>
    %162 = vector.extract_strided_slice %147 {offsets = [0, 32], sizes = [16, 32], strides = [1, 1]} : vector<16x96xf32> to vector<16x32xf32>
    %163 = vector.extract_strided_slice %145 {offsets = [1, 0], sizes = [1, 32], strides = [1, 1]} : vector<10x32xf32> to vector<1x32xf32>
    %164 = vector.broadcast %163 : vector<1x32xf32> to vector<16x32xf32>
    %165 = arith.addf %162, %164 : vector<16x32xf32>
    %166 = vector.extract_strided_slice %165 {offsets = [0, 0], sizes = [16, 8], strides = [1, 1]} : vector<16x32xf32> to vector<16x8xf32>
    %167 = vector.shape_cast %166 : vector<16x8xf32> to vector<1x1x16x8xf32>
    %168 = vector.extract_strided_slice %165 {offsets = [0, 8], sizes = [16, 8], strides = [1, 1]} : vector<16x32xf32> to vector<16x8xf32>
    %169 = vector.shape_cast %168 : vector<16x8xf32> to vector<1x1x16x8xf32>
    %170 = vector.extract_strided_slice %165 {offsets = [0, 16], sizes = [16, 8], strides = [1, 1]} : vector<16x32xf32> to vector<16x8xf32>
    %171 = vector.shape_cast %170 : vector<16x8xf32> to vector<1x1x16x8xf32>
    %172 = vector.extract_strided_slice %165 {offsets = [0, 24], sizes = [16, 8], strides = [1, 1]} : vector<16x32xf32> to vector<16x8xf32>
    %173 = vector.shape_cast %172 : vector<16x8xf32> to vector<1x1x16x8xf32>
    %174 = tpu.concatenate %167, %169, %171, %173 in 0 : vector<1x1x16x8xf32>, vector<1x1x16x8xf32>, vector<1x1x16x8xf32>, vector<1x1x16x8xf32> -> vector<4x1x16x8xf32>
    %175 = vector.shape_cast %174 : vector<4x1x16x8xf32> to vector<4x16x8xf32>
    %176 = vector.extract_strided_slice %147 {offsets = [0, 64], sizes = [16, 32], strides = [1, 1]} : vector<16x96xf32> to vector<16x32xf32>
    %177 = vector.extract_strided_slice %145 {offsets = [2, 0], sizes = [1, 32], strides = [1, 1]} : vector<10x32xf32> to vector<1x32xf32>
    %178 = vector.broadcast %177 : vector<1x32xf32> to vector<16x32xf32>
    %179 = arith.addf %176, %178 : vector<16x32xf32>
    %180 = vector.extract_strided_slice %179 {offsets = [0, 0], sizes = [16, 8], strides = [1, 1]} : vector<16x32xf32> to vector<16x8xf32>
    %181 = vector.shape_cast %180 : vector<16x8xf32> to vector<1x1x16x8xf32>
    %182 = vector.extract_strided_slice %179 {offsets = [0, 8], sizes = [16, 8], strides = [1, 1]} : vector<16x32xf32> to vector<16x8xf32>
    %183 = vector.shape_cast %182 : vector<16x8xf32> to vector<1x1x16x8xf32>
    %184 = vector.extract_strided_slice %179 {offsets = [0, 16], sizes = [16, 8], strides = [1, 1]} : vector<16x32xf32> to vector<16x8xf32>
    %185 = vector.shape_cast %184 : vector<16x8xf32> to vector<1x1x16x8xf32>
    %186 = vector.extract_strided_slice %179 {offsets = [0, 24], sizes = [16, 8], strides = [1, 1]} : vector<16x32xf32> to vector<16x8xf32>
    %187 = vector.shape_cast %186 : vector<16x8xf32> to vector<1x1x16x8xf32>
    %188 = tpu.concatenate %181, %183, %185, %187 in 0 : vector<1x1x16x8xf32>, vector<1x1x16x8xf32>, vector<1x1x16x8xf32>, vector<1x1x16x8xf32> -> vector<4x1x16x8xf32>
    %189 = vector.shape_cast %188 : vector<4x1x16x8xf32> to vector<4x16x8xf32>
    %cst_36 = arith.constant dense<0.000000e+00> : vector<4x16x16xf32>
    %190 = tpu.matmul %161, %175, %cst_36 {dimension_numbers = #tpu.dot_dimension_numbers<[2], [2], [1], [1], [0, 0, 0, 1, 1, 1], [0], [0]>} : vector<4x16x8xf32>, vector<4x16x8xf32>, vector<4x16x16xf32> -> vector<4x16x16xf32>
    %cst_37 = arith.constant 0.353553385 : f32
    %191 = vector.broadcast %cst_37 : f32 to vector<4x16x16xf32>
    %192 = arith.mulf %190, %191 : vector<4x16x16xf32>
    %cst_38 = arith.constant dense<0xFF800000> : vector<4x16xf32>
    %193 = vector.multi_reduction <maximumf>, %192, %cst_38 [2] : vector<4x16x16xf32> to vector<4x16xf32>
    %194 = vector.shape_cast %193 : vector<4x16xf32> to vector<4x16x1xf32>
    %195 = vector.broadcast %194 : vector<4x16x1xf32> to vector<4x16x16xf32>
    %196 = arith.subf %192, %195 : vector<4x16x16xf32>
    %197 = math.exp %196 : vector<4x16x16xf32>
    %cst_39 = arith.constant dense<0.000000e+00> : vector<4x16xf32>
    %198 = vector.multi_reduction <add>, %197, %cst_39 [2] : vector<4x16x16xf32> to vector<4x16xf32>
    %199 = vector.shape_cast %198 : vector<4x16xf32> to vector<4x16x1xf32>
    %200 = tpu.reciprocal %199 {approx = true} : vector<4x16x1xf32> -> vector<4x16x1xf32>
    %201 = vector.broadcast %200 : vector<4x16x1xf32> to vector<4x16x16xf32>
    %202 = arith.mulf %197, %201 : vector<4x16x16xf32>
    %cst_40 = arith.constant dense<0.000000e+00> : vector<4x16x8xf32>
    %203 = tpu.matmul %202, %189, %cst_40 {dimension_numbers = #tpu.dot_dimension_numbers<[2], [1], [1], [2], [0, 0, 0, 1, 1, 2], [0], [0]>} : vector<4x16x16xf32>, vector<4x16x8xf32>, vector<4x16x8xf32> -> vector<4x16x8xf32>
    %204 = vector.extract_strided_slice %143 {offsets = [0, 128], sizes = [8, 32], strides = [1, 1]} : vector<32x512xf32> to vector<8x32xf32>
    %205 = vector.extract_strided_slice %143 {offsets = [8, 128], sizes = [8, 32], strides = [1, 1]} : vector<32x512xf32> to vector<8x32xf32>
    %206 = vector.extract_strided_slice %143 {offsets = [16, 128], sizes = [8, 32], strides = [1, 1]} : vector<32x512xf32> to vector<8x32xf32>
    %207 = vector.extract_strided_slice %143 {offsets = [24, 128], sizes = [8, 32], strides = [1, 1]} : vector<32x512xf32> to vector<8x32xf32>
    %208 = vector.shape_cast %204 : vector<8x32xf32> to vector<1x8x32xf32>
    %209 = vector.shape_cast %205 : vector<8x32xf32> to vector<1x8x32xf32>
    %210 = vector.shape_cast %206 : vector<8x32xf32> to vector<1x8x32xf32>
    %211 = vector.shape_cast %207 : vector<8x32xf32> to vector<1x8x32xf32>
    %212 = tpu.concatenate %208, %209, %210, %211 in 0 : vector<1x8x32xf32>, vector<1x8x32xf32>, vector<1x8x32xf32>, vector<1x8x32xf32> -> vector<4x8x32xf32>
    %cst_41 = arith.constant dense<0.000000e+00> : vector<4x16x32xf32>
    %213 = tpu.matmul %203, %212, %cst_41 {dimension_numbers = #tpu.dot_dimension_numbers<[2], [1], [1], [2], [0, 0, 0, 1, 1, 2], [0], [0]>} : vector<4x16x8xf32>, vector<4x8x32xf32>, vector<4x16x32xf32> -> vector<4x16x32xf32>
    %cst_42 = arith.constant dense<0.000000e+00> : vector<16x32xf32>
    %214 = vector.multi_reduction <add>, %213, %cst_42 [0] : vector<4x16x32xf32> to vector<16x32xf32>
    %215 = vector.extract_strided_slice %145 {offsets = [3, 0], sizes = [1, 32], strides = [1, 1]} : vector<10x32xf32> to vector<1x32xf32>
    %216 = vector.broadcast %215 : vector<1x32xf32> to vector<16x32xf32>
    %217 = arith.addf %214, %216 : vector<16x32xf32>
    %218 = arith.addf %141, %217 : vector<16x32xf32>
    %219 = vector.extract_strided_slice %145 {offsets = [6, 0], sizes = [1, 32], strides = [1, 1]} : vector<10x32xf32> to vector<1x32xf32>
    %220 = vector.extract_strided_slice %145 {offsets = [7, 0], sizes = [1, 32], strides = [1, 1]} : vector<10x32xf32> to vector<1x32xf32>
    %cst_43 = arith.constant dense<0.000000e+00> : vector<16xf32>
    %221 = vector.multi_reduction <add>, %218, %cst_43 [1] : vector<16x32xf32> to vector<16xf32>
    %222 = vector.shape_cast %221 : vector<16xf32> to vector<16x1xf32>
    %cst_44 = arith.constant 3.200000e+01 : f32
    %223 = vector.broadcast %cst_44 : f32 to vector<16x1xf32>
    %224 = arith.divf %222, %223 : vector<16x1xf32>
    %225 = vector.broadcast %224 : vector<16x1xf32> to vector<16x32xf32>
    %226 = arith.subf %218, %225 : vector<16x32xf32>
    %227 = arith.mulf %226, %226 : vector<16x32xf32>
    %cst_45 = arith.constant dense<0.000000e+00> : vector<16xf32>
    %228 = vector.multi_reduction <add>, %227, %cst_45 [1] : vector<16x32xf32> to vector<16xf32>
    %229 = vector.shape_cast %228 : vector<16xf32> to vector<16x1xf32>
    %cst_46 = arith.constant 3.200000e+01 : f32
    %230 = vector.broadcast %cst_46 : f32 to vector<16x1xf32>
    %231 = arith.divf %229, %230 : vector<16x1xf32>
    %cst_47 = arith.constant 9.99999974E-6 : f32
    %232 = vector.broadcast %cst_47 : f32 to vector<16x1xf32>
    %233 = arith.addf %231, %232 : vector<16x1xf32>
    %234 = math.rsqrt %233 : vector<16x1xf32>
    %235 = vector.broadcast %234 : vector<16x1xf32> to vector<16x32xf32>
    %236 = arith.mulf %226, %235 : vector<16x32xf32>
    %237 = vector.broadcast %219 : vector<1x32xf32> to vector<16x32xf32>
    %238 = arith.mulf %236, %237 : vector<16x32xf32>
    %239 = vector.broadcast %220 : vector<1x32xf32> to vector<16x32xf32>
    %240 = arith.addf %238, %239 : vector<16x32xf32>
    %241 = vector.extract_strided_slice %143 {offsets = [0, 256], sizes = [32, 32], strides = [1, 1]} : vector<32x512xf32> to vector<32x32xf32>
    %cst_48 = arith.constant dense<0.000000e+00> : vector<16x32xf32>
    %242 = tpu.matmul %240, %241, %cst_48 {dimension_numbers = #tpu.dot_dimension_numbers<[1], [0], [0], [1], [0, 0, 1, 1], [], []>} : vector<16x32xf32>, vector<32x32xf32>, vector<16x32xf32> -> vector<16x32xf32>
    %243 = vector.extract_strided_slice %145 {offsets = [4, 0], sizes = [1, 32], strides = [1, 1]} : vector<10x32xf32> to vector<1x32xf32>
    %244 = vector.broadcast %243 : vector<1x32xf32> to vector<16x32xf32>
    %245 = arith.addf %242, %244 : vector<16x32xf32>
    %cst_49 = arith.constant 0.000000e+00 : f32
    %246 = vector.broadcast %cst_49 : f32 to vector<16x32xf32>
    %247 = arith.maximumf %245, %246 : vector<16x32xf32>
    %248 = vector.extract_strided_slice %143 {offsets = [0, 384], sizes = [32, 32], strides = [1, 1]} : vector<32x512xf32> to vector<32x32xf32>
    %cst_50 = arith.constant dense<0.000000e+00> : vector<16x32xf32>
    %249 = tpu.matmul %247, %248, %cst_50 {dimension_numbers = #tpu.dot_dimension_numbers<[1], [0], [0], [1], [0, 0, 1, 1], [], []>} : vector<16x32xf32>, vector<32x32xf32>, vector<16x32xf32> -> vector<16x32xf32>
    %250 = vector.extract_strided_slice %145 {offsets = [5, 0], sizes = [1, 32], strides = [1, 1]} : vector<10x32xf32> to vector<1x32xf32>
    %251 = vector.broadcast %250 : vector<1x32xf32> to vector<16x32xf32>
    %252 = arith.addf %249, %251 : vector<16x32xf32>
    %253 = arith.addf %240, %252 : vector<16x32xf32>
    %254 = vector.extract_strided_slice %145 {offsets = [8, 0], sizes = [1, 32], strides = [1, 1]} : vector<10x32xf32> to vector<1x32xf32>
    %255 = vector.extract_strided_slice %145 {offsets = [9, 0], sizes = [1, 32], strides = [1, 1]} : vector<10x32xf32> to vector<1x32xf32>
    %cst_51 = arith.constant dense<0.000000e+00> : vector<16xf32>
    %256 = vector.multi_reduction <add>, %253, %cst_51 [1] : vector<16x32xf32> to vector<16xf32>
    %257 = vector.shape_cast %256 : vector<16xf32> to vector<16x1xf32>
    %cst_52 = arith.constant 3.200000e+01 : f32
    %258 = vector.broadcast %cst_52 : f32 to vector<16x1xf32>
    %259 = arith.divf %257, %258 : vector<16x1xf32>
    %260 = vector.broadcast %259 : vector<16x1xf32> to vector<16x32xf32>
    %261 = arith.subf %253, %260 : vector<16x32xf32>
    %262 = arith.mulf %261, %261 : vector<16x32xf32>
    %cst_53 = arith.constant dense<0.000000e+00> : vector<16xf32>
    %263 = vector.multi_reduction <add>, %262, %cst_53 [1] : vector<16x32xf32> to vector<16xf32>
    %264 = vector.shape_cast %263 : vector<16xf32> to vector<16x1xf32>
    %cst_54 = arith.constant 3.200000e+01 : f32
    %265 = vector.broadcast %cst_54 : f32 to vector<16x1xf32>
    %266 = arith.divf %264, %265 : vector<16x1xf32>
    %cst_55 = arith.constant 9.99999974E-6 : f32
    %267 = vector.broadcast %cst_55 : f32 to vector<16x1xf32>
    %268 = arith.addf %266, %267 : vector<16x1xf32>
    %269 = math.rsqrt %268 : vector<16x1xf32>
    %270 = vector.broadcast %269 : vector<16x1xf32> to vector<16x32xf32>
    %271 = arith.mulf %261, %270 : vector<16x32xf32>
    %272 = vector.broadcast %254 : vector<1x32xf32> to vector<16x32xf32>
    %273 = arith.mulf %271, %272 : vector<16x32xf32>
    %274 = vector.broadcast %255 : vector<1x32xf32> to vector<16x32xf32>
    %275 = arith.addf %273, %274 : vector<16x32xf32>
    %c4 = arith.constant 4 : index
    %c0_56 = arith.constant 0 : index
    %276 = vector.load %arg4[%c4, %c0_56] : memref<11x32xf32, #tpu.memory_space<vmem>>, vector<1x32xf32>
    %c5 = arith.constant 5 : index
    %c0_57 = arith.constant 0 : index
    %277 = vector.load %arg4[%c5, %c0_57] : memref<11x32xf32, #tpu.memory_space<vmem>>, vector<1x32xf32>
    %cst_58 = arith.constant dense<0.000000e+00> : vector<16xf32>
    %278 = vector.multi_reduction <add>, %275, %cst_58 [1] : vector<16x32xf32> to vector<16xf32>
    %279 = vector.shape_cast %278 : vector<16xf32> to vector<16x1xf32>
    %cst_59 = arith.constant 3.200000e+01 : f32
    %280 = vector.broadcast %cst_59 : f32 to vector<16x1xf32>
    %281 = arith.divf %279, %280 : vector<16x1xf32>
    %282 = vector.broadcast %281 : vector<16x1xf32> to vector<16x32xf32>
    %283 = arith.subf %275, %282 : vector<16x32xf32>
    %284 = arith.mulf %283, %283 : vector<16x32xf32>
    %cst_60 = arith.constant dense<0.000000e+00> : vector<16xf32>
    %285 = vector.multi_reduction <add>, %284, %cst_60 [1] : vector<16x32xf32> to vector<16xf32>
    %286 = vector.shape_cast %285 : vector<16xf32> to vector<16x1xf32>
    %cst_61 = arith.constant 3.200000e+01 : f32
    %287 = vector.broadcast %cst_61 : f32 to vector<16x1xf32>
    %288 = arith.divf %286, %287 : vector<16x1xf32>
    %cst_62 = arith.constant 9.99999974E-6 : f32
    %289 = vector.broadcast %cst_62 : f32 to vector<16x1xf32>
    %290 = arith.addf %288, %289 : vector<16x1xf32>
    %291 = math.rsqrt %290 : vector<16x1xf32>
    %292 = vector.broadcast %291 : vector<16x1xf32> to vector<16x32xf32>
    %293 = arith.mulf %283, %292 : vector<16x32xf32>
    %294 = vector.broadcast %276 : vector<1x32xf32> to vector<16x32xf32>
    %295 = arith.mulf %293, %294 : vector<16x32xf32>
    %296 = vector.broadcast %277 : vector<1x32xf32> to vector<16x32xf32>
    %297 = arith.addf %295, %296 : vector<16x32xf32>
    %c7 = arith.constant 7 : index
    %c0_63 = arith.constant 0 : index
    %298 = vector.load %arg4[%c7, %c0_63] : memref<11x32xf32, #tpu.memory_space<vmem>>, vector<4x32xf32>
    %cst_64 = arith.constant dense<0.000000e+00> : vector<16x4xf32>
    %299 = tpu.matmul %297, %298, %cst_64 {dimension_numbers = #tpu.dot_dimension_numbers<[1], [1], [0], [0], [0, 0, 1, 0], [], []>} : vector<16x32xf32>, vector<4x32xf32>, vector<16x4xf32> -> vector<16x4xf32>
    %c6 = arith.constant 6 : index
    %c0_65 = arith.constant 0 : index
    %300 = vector.load %arg4[%c6, %c0_65] : memref<11x32xf32, #tpu.memory_space<vmem>>, vector<1x4xf32>
    %301 = vector.broadcast %300 : vector<1x4xf32> to vector<16x4xf32>
    %302 = arith.addf %299, %301 : vector<16x4xf32>
    %c0_66 = arith.constant 0 : index
    %c0_67 = arith.constant 0 : index
    %303 = vector.load %arg5[%c0_66, %c0_67] : memref<16x4xf32, #tpu.memory_space<vmem>>, vector<16x4xf32>
    tpu.vector_store %arg5[%c0_66, %c0_67], %302 {strides = array<i32>} : memref<16x4xf32, #tpu.memory_space<vmem>>, vector<16x4xf32>,
    return
  }
  func.func @transform_0(%arg0: i32) -> (i32, i32) {
    %c0_i32 = arith.constant 0 : i32
    %c0_i32_0 = arith.constant 0 : i32
    return %arg0, %c0_i32 : i32, i32
  }
  func.func @transform_1(%arg0: i32) -> (i32, i32, i32) {
    %c0_i32 = arith.constant 0 : i32
    %c0_i32_0 = arith.constant 0 : i32
    %c0_i32_1 = arith.constant 0 : i32
    %c0_i32_2 = arith.constant 0 : i32
    return %c0_i32, %c0_i32_0, %c0_i32_1 : i32, i32, i32
  }
  func.func @transform_2(%arg0: i32) -> (i32, i32, i32) {
    %c0_i32 = arith.constant 0 : i32
    %c0_i32_0 = arith.constant 0 : i32
    %c0_i32_1 = arith.constant 0 : i32
    %c0_i32_2 = arith.constant 0 : i32
    return %c0_i32, %c0_i32_0, %c0_i32_1 : i32, i32, i32
  }
  func.func @transform_3(%arg0: i32) -> (i32, i32) {
    %c0_i32 = arith.constant 0 : i32
    %c0_i32_0 = arith.constant 0 : i32
    %c0_i32_1 = arith.constant 0 : i32
    return %c0_i32, %c0_i32_0 : i32, i32
  }
  func.func @transform_4(%arg0: i32) -> (i32, i32) {
    %c0_i32 = arith.constant 0 : i32
    %c0_i32_0 = arith.constant 0 : i32
    return %arg0, %c0_i32 : i32, i32
  }
}

</mosaic_0001>

<llo_original>
// kernel: transformer_forward.1
$region0: #{transformer_forward.1}
  #allocation0 [shape = 'u32[]', space=smem, size = 0x4, offset = 0x4, fixed_abs, tag = 'smem constant byte address 0x4 - core index']
  #allocation1 [shape = 'u32[72,128]{1,0:T(1,128)}', space=vmem, size = 0x9000, scoped, tag = 'internal scratch']
  %s0 = inlined_call_operand.vmem [shape: s32[32,1], index: 0, kind: input, shape index: {}]
  %s1 = inlined_call_operand.vmem [shape: f32[2,10,32], index: 1, kind: input, shape index: {}]
  %s2 = inlined_call_operand.hbm [shape: f32[2,32,512], index: 2, kind: input, shape index: {}]
  %s3 = inlined_call_operand.vmem [shape: f32[11,32], index: 3, kind: input, shape index: {}]
  %s4 = inlined_call_operand.vmem [shape: f32[32,4], index: 4, kind: output, shape index: {}]
  %s5 = sld [smem:[#allocation0]]
  $region53: #{transformer_forward.1} parent=0
    _
  %s7 = ssub.s32 1, %s5
  %s8 = scalar_select 0, %s7, %s5
  $region1: #{transformer_forward.1} parent=0
    #allocation2 [shape = 'u8[131072]{0}', space=vmem, size = 0x20000, scoped, tag = 'input window, operand 2, single buffered']
    #allocation3 [shape = 's32[2]{0}', space=sflag, size = 0x8, scoped, tag = 'scoped memory for transformer_forward.1']
    %9 = vsyncpa [#allocation3], 0
    loop: start=0, step=1, limit=4
    $region2: #{transformer_forward.1} parent=1 // loop_pre_header
      _
    $region3: #{transformer_forward.1} parent=1 // loop_header
      %s11 = sphi 0, %s15
      %p12 = scmp.ge.s32.totalorder %s11, 4
      %s21 = sphi 0, %s23
      %s24 = sphi 0, %s21
      %s25 = sphi 0, %s24
      %s41 = sphi 0, %s25
      %s45 = sphi 0, %s45
      %s47 = sphi 0, %s45
      %s48 = sphi 0, %s47
      %s62 = sphi 0, %s48
      %s66 = sphi 0, %s66
      %s68 = sphi 0, %s66
      %s69 = sphi 0, %s68
      %s83 = sphi 0, %s69
      %s87 = sphi 0, %s87
      %s89 = sphi 0, %s87
      %s90 = sphi 0, %s89
      %s104 = sphi 0, %s90
      %s110 = sphi 0, %s112
      %s113 = sphi 0, %s110
      %s114 = sphi 0, %s113
      %s130 = sphi 0, %s114
    $region4: #{transformer_forward.1} parent=1 // loop_header_branch
      %14 = sbr.rel (%p12) target = $region8
    $region5: #{transformer_forward.1} parent=1 // loop_body
      %s16 = ssub.s32 %s11, 1
      %s17 = ssub.s32 %s11, 2
      %s18 = sadd.s32 %s11, 1
      %s19 = ssub.s32 %s11, %s18
      %p20 = scmp.eq.s32.totalorder %s19, 0
      %s22 = sadd.s32 %s21, 1
      %s23 = scalar_select %p20, %s21, %s22
      %p26 = pneg %p20
      %p27 = scmp.eq.s32.totalorder %s11, 1
      %p28 = por %p26, %p27
      %p29 = scmp.ne.s32.totalorder %s21, %s24
      %p30 = scmp.eq.s32.totalorder %s11, 0
      %p31 = por %p29, %p30
      %p32 = scmp.ne.s32.totalorder %s21, %s24
      %p33 = scmp.eq.s32.totalorder %s16, 1
      %p34 = por %p32, %p33
      %p35 = scmp.ne.s32.totalorder %s24, %s25
      %p36 = scmp.eq.s32.totalorder %s16, 0
      %p37 = por %p35, %p36
      %p38 = scmp.ne.s32.totalorder %s24, %s25
      %p39 = scmp.eq.s32.totalorder %s17, 1
      %p40 = por %p38, %p39
      %p42 = scmp.ne.s32.totalorder %s25, %s41
      %p43 = scmp.eq.s32.totalorder %s17, 0
      %p44 = por %p42, %p43
      %s46 = sadd.s32 %s45, 1
      %p49 = scmp.eq.s32.totalorder %s11, 1
      %p50 = scmp.ne.s32.totalorder %s45, %s47
      %p51 = scmp.eq.s32.totalorder %s11, 0
      %p52 = por %p50, %p51
      %p53 = scmp.ne.s32.totalorder %s45, %s47
      %p54 = scmp.eq.s32.totalorder %s16, 1
      %p55 = por %p53, %p54
      %p56 = scmp.ne.s32.totalorder %s47, %s48
      %p57 = scmp.eq.s32.totalorder %s16, 0
      %p58 = por %p56, %p57
      %p59 = scmp.ne.s32.totalorder %s47, %s48
      %p60 = scmp.eq.s32.totalorder %s17, 1
      %p61 = por %p59, %p60
      %p63 = scmp.ne.s32.totalorder %s48, %s62
      %p64 = scmp.eq.s32.totalorder %s17, 0
      %p65 = por %p63, %p64
      %s67 = sadd.s32 %s66, 1
      %p70 = scmp.eq.s32.totalorder %s11, 1
      %p71 = scmp.ne.s32.totalorder %s66, %s68
      %p72 = scmp.eq.s32.totalorder %s11, 0
      %p73 = por %p71, %p72
      %p74 = scmp.ne.s32.totalorder %s66, %s68
      %p75 = scmp.eq.s32.totalorder %s16, 1
      %p76 = por %p74, %p75
      %p77 = scmp.ne.s32.totalorder %s68, %s69
      %p78 = scmp.eq.s32.totalorder %s16, 0
      %p79 = por %p77, %p78
      %p80 = scmp.ne.s32.totalorder %s68, %s69
      %p81 = scmp.eq.s32.totalorder %s17, 1
      %p82 = por %p80, %p81
      %p84 = scmp.ne.s32.totalorder %s69, %s83
      %p85 = scmp.eq.s32.totalorder %s17, 0
      %p86 = por %p84, %p85
      %s88 = sadd.s32 %s87, 1
      %p91 = scmp.eq.s32.totalorder %s11, 1
      %p92 = scmp.ne.s32.totalorder %s87, %s89
      %p93 = scmp.eq.s32.totalorder %s11, 0
      %p94 = por %p92, %p93
      %p95 = scmp.ne.s32.totalorder %s87, %s89
      %p96 = scmp.eq.s32.totalorder %s16, 1
      %p97 = por %p95, %p96
      %p98 = scmp.ne.s32.totalorder %s89, %s90
      %p99 = scmp.eq.s32.totalorder %s16, 0
      %p100 = por %p98, %p99
      %p101 = scmp.ne.s32.totalorder %s89, %s90
      %p102 = scmp.eq.s32.totalorder %s17, 1
      %p103 = por %p101, %p102
      %p105 = scmp.ne.s32.totalorder %s90, %s104
      %p106 = scmp.eq.s32.totalorder %s17, 0
      %p107 = por %p105, %p106
      %s108 = ssub.s32 %s11, %s18
      %p109 = scmp.eq.s32.totalorder %s108, 0
      %s111 = sadd.s32 %s110, 1
      %s112 = scalar_select %p109, %s110, %s111
      %p115 = pneg %p109
      %p116 = scmp.eq.s32.totalorder %s11, 1
      %p117 = por %p115, %p116
      %p118 = scmp.ne.s32.totalorder %s110, %s113
      %p119 = scmp.eq.s32.totalorder %s11, 0
      %p120 = por %p118, %p119
      %p121 = scmp.ne.s32.totalorder %s110, %s113
      %p122 = scmp.eq.s32.totalorder %s16, 1
      %p123 = por %p121, %p122
      %p124 = scmp.ne.s32.totalorder %s113, %s114
      %p125 = scmp.eq.s32.totalorder %s16, 0
      %p126 = por %p124, %p125
      %p127 = scmp.ne.s32.totalorder %s113, %s114
      %p128 = scmp.eq.s32.totalorder %s17, 1
      %p129 = por %p127, %p128
      %p131 = scmp.ne.s32.totalorder %s114, %s130
      %p132 = scmp.eq.s32.totalorder %s17, 0
      %p133 = por %p131, %p132
      %p134 = scmp.le.s32.totalorder 1, %s11
      %p135 = scmp.lt.s32.totalorder %s11, 3
      %p136 = pnand %p134, %p135
      %p137 = pneg %p136
      // Predicated region
      $region9: #{transformer_forward.1} parent=5 // pred_check
        _
      $region10: #{transformer_forward.1} parent=5 // pred_check_branch
        %139 = sbr.rel (%p136) target = $region12
      $region11: #{transformer_forward.1} parent=5 // pred_region
        %s140 = ssub.s32 %s11, 1
        // Predicated region
        $region13: #{transformer_forward.1} parent=11 // pred_check
          %p141 = pneg %p58
        $region14: #{transformer_forward.1} parent=11 // pred_check_branch
          %143 = sbr.rel (%p141) target = $region16
        $region15: #{transformer_forward.1} parent=11 // pred_region
          _
        $region16: #{transformer_forward.1} parent=11 // pred_fallthru
          _
        // Predicated region
        $region17: #{transformer_forward.1} parent=11 // pred_check
          %p144 = pneg %p79
        $region18: #{transformer_forward.1} parent=11 // pred_check_branch
          %146 = sbr.rel (%p144) target = $region20
        $region19: #{transformer_forward.1} parent=11 // pred_region
          %148 = vsyncadd [#allocation3], 0
          %s149 = sshll.u32 %s2, 4
          %s150 = int_to_ptr.hbm [resolvable:$true] %s149
          %s151 = sshll.u32 [#allocation2], 4
          %s152 = int_to_ptr.vmem [resolvable:$true] %s151
          %157 = dma.hbm_to_vmem [thread:$0]  %s150, 4096, %s152, [#allocation3], 512, 512, 32
        $region20: #{transformer_forward.1} parent=11 // pred_fallthru
          _
        // Predicated region
        $region21: #{transformer_forward.1} parent=11 // pred_check
          %p158 = pneg %p100
        $region22: #{transformer_forward.1} parent=11 // pred_check_branch
          %160 = sbr.rel (%p158) target = $region24
        $region23: #{transformer_forward.1} parent=11 // pred_region
          _
        $region24: #{transformer_forward.1} parent=11 // pred_fallthru
          _
      $region12: #{transformer_forward.1} parent=5 // pred_fallthru
        _
      %p161 = scmp.lt.s32.totalorder %s11, 2
      // Predicated region
      $region25: #{transformer_forward.1} parent=5 // pred_check
        %p162 = pneg %p161
      $region26: #{transformer_forward.1} parent=5 // pred_check_branch
        %164 = sbr.rel (%p162) target = $region28
      $region27: #{transformer_forward.1} parent=5 // pred_region
        // Predicated region
        $region29: #{transformer_forward.1} parent=27 // pred_check
          %p165 = pneg %p31
        $region30: #{transformer_forward.1} parent=27 // pred_check_branch
          %167 = sbr.rel (%p165) target = $region32
        $region31: #{transformer_forward.1} parent=27 // pred_region
          %s168 = smul.u32 2, %s11
          %p169 = scmp.lt.s32.totalorder %s168, 3
          %s170 = scalar_select %p169, %s168, 3
          %s171 = smul.addr %s170, 8
          %s172 = scalar_lea.vmem %s0, %s171
          %s173 = smul.u32 2, %s11
        $region32: #{transformer_forward.1} parent=27 // pred_fallthru
          _
      $region28: #{transformer_forward.1} parent=5 // pred_fallthru
        _
      %p174 = scmp.le.s32.totalorder 1, %s11
      %p175 = scmp.lt.s32.totalorder %s11, 3
      %p176 = pnand %p174, %p175
      %p177 = pneg %p176
      // Predicated region
      $region33: #{transformer_forward.1} parent=5 // pred_check
        _
      $region34: #{transformer_forward.1} parent=5 // pred_check_branch
        %179 = sbr.rel (%p176) target = $region36
      $region35: #{transformer_forward.1} parent=5 // pred_region
        %s180 = ssub.s32 %s11, 1
        // Predicated region
        $region37: #{transformer_forward.1} parent=35 // pred_check
          %p181 = pneg %p79
        $region38: #{transformer_forward.1} parent=35 // pred_check_branch
          %183 = sbr.rel (%p181) target = $region40
        $region39: #{transformer_forward.1} parent=35 // pred_region
          %185 = dma.done [#allocation3], 4096
        $region40: #{transformer_forward.1} parent=35 // pred_fallthru
          _
        %s186 = smul.u32 2, %s16
        %p187 = scmp.lt.s32.totalorder %s186, 3
        %s188 = scalar_select %p187, %s186, 3
        %s189 = smul.addr %s188, 8
        %s190 = scalar_lea.vmem %s0, %s189
        %p191 = pneg %p37
        %p192 = pneg %p34
        %p193 = pneg %p58
        %p194 = pneg %p55
        %p195 = pneg %p79
        %p196 = pneg %p76
        %p197 = pneg %p100
        %p198 = pneg %p97
        %p199 = pneg %p126
        %p200 = pneg %p123
        %s201 = smul.u32 2, %s16
        %p202 = scmp.lt.s32.totalorder %s201, 3
        %s203 = scalar_select %p202, %s201, 3
        %s204 = smul.addr %s203, 8
        %s205 = scalar_lea.vmem %s4, %s204
        %s206 = smul.u32 2, %s16
        %p207 = scmp.lt.s32.totalorder %s206, 3
        %s208 = scalar_select %p207, %s206, 3
        %s209 = smul.addr %s208, 8
        %s210 = scalar_lea.vmem %s0, %s209
        %s211 = smul.u32 2, %s16
        %s212 = smul.u32 2, %s16
        %p213 = scmp.lt.s32.totalorder %s212, 3
        %s214 = scalar_select %p213, %s212, 3
        %s215 = smul.addr %s214, 8
        %s216 = scalar_lea.vmem %s4, %s215
        %s217 = smul.u32 2, %s16
        %v218 = vld [vmem:[%s210] sm:$0xff]
        %v219 = vld [vmem:[%s210 + $0x8] sm:$0xff]
        %v220 = vlaneseq
        %v221 = vand.u32 %v220, 127
        %222 = vset.pattern.permute.xlu0 0
        %223 = vperm.xlu0 %222, %v218
        %v224 = vpop.permute.xlu0 %223
        %225 = vset.pattern.permute.xlu0 0
        %226 = vperm.xlu0 %225, %v219
        %v227 = vpop.permute.xlu0 %226
        %vm228 = vcmp.eq.s32.totalorder %v224, %v221
        %vm229 = vcmp.eq.s32.totalorder %v227, %v221
        %v230 = vsel %vm228, 1, 0
        %v231 = vsel %vm229, 1, 0
        %v232 = vcvt.s32.f32 %v230
        %v233 = vcvt.s32.f32 %v231
        %v234 = vld [vmem:[%s3] sm:$0xf]
        %vm235 = vcmask 31744
        %v237 = vsel %vm235, %v232, 0
        %v240 = vsel %vm235, %v233, 0
        %vm242 = vcmask 1043456
        %v244 = vsel %vm242, %v234, 0
        %246 = vmatpush.msra.mxu0 0.0
        %247 = vmatpush.msra.mxu0 0.0
        %248 = vmatpush.msra.mxu0 0.0
        %249 = vmatpush.msra.mxu0 0.0
        %250 = vmatpush.msra.mxu0 0.0
        %251 = vmatpush.msra.mxu0 0.0
        %252 = vmatpush.msra.mxu0 0.0
        %253 = vmatpush.msra.mxu0 0.0
        %254 = vmatpush.msra.mxu0 0.0
        %255 = vmatpush.msra.mxu0 0.0
        %256 = vmatpush.msra.mxu0 0.0
        %257 = vmatpush.msra.mxu0 0.0
        %258 = vmatpush.msra.mxu0 0.0
        %259 = vmatpush.msra.mxu0 0.0
        %260 = vmatpush.msra.mxu0 0.0
        %261 = vmatpush.msra.mxu0 %v244
        %262 = vmatmul.f32.gmra.mxu0 %v237
        %v263 = vpop.f32.mrf.mxu0
        %v264 = vadd.f32 0.0, %v263
        %265 = vmatmul.f32.gmra.mxu0 %v240
        %v266 = vpop.f32.mrf.mxu0
        %v267 = vadd.f32 0.0, %v266
        %268 = vdwg.mxu0
        %v269 = vld [vmem:[#allocation2] sm:$0xff]
        %v270 = vld [vmem:[#allocation2 + $0x8] sm:$0xff]
        %v271 = vld [vmem:[#allocation2 + $0x10] sm:$0xff]
        %v272 = vld [vmem:[#allocation2 + $0x18] sm:$0xff]
        %v273 = vld [vmem:[#allocation2 + $0x20] sm:$0xff]
        %v274 = vld [vmem:[#allocation2 + $0x28] sm:$0xff]
        %v275 = vld [vmem:[#allocation2 + $0x30] sm:$0xff]
        %v276 = vld [vmem:[#allocation2 + $0x38] sm:$0xff]
        %v277 = vld [vmem:[#allocation2 + $0x40] sm:$0xff]
        %v278 = vld [vmem:[#allocation2 + $0x48] sm:$0xff]
        %v279 = vld [vmem:[#allocation2 + $0x50] sm:$0xff]
        %v280 = vld [vmem:[#allocation2 + $0x58] sm:$0xff]
        %v281 = vld [vmem:[#allocation2 + $0x60] sm:$0xff]
        %v282 = vld [vmem:[#allocation2 + $0x68] sm:$0xff]
        %v283 = vld [vmem:[#allocation2 + $0x70] sm:$0xff]
        %v284 = vld [vmem:[#allocation2 + $0x78] sm:$0xff]
        %v285 = vld [vmem:[%s1] sm:$0xff]
        %v286 = vld [vmem:[%s1 + $0x8] sm:$0x3]
        %vm287 = vcmask 261120
        %v289 = vsel %vm287, %v264, 0
        %v292 = vsel %vm287, %v267, 0
        %294 = vmatpush.msra.mxu0 0.0
        %295 = vmatpush.msra.mxu0 0.0
        %296 = vmatpush.msra.mxu0 0.0
        %297 = vmatpush.msra.mxu0 0.0
        %298 = vmatpush.msra.mxu0 0.0
        %299 = vmatpush.msra.mxu0 0.0
        %300 = vmatpush.msra.mxu0 0.0
        %301 = vmatpush.msra.mxu0 0.0
        %302 = vmatpush.msra.mxu0 0.0
        %303 = vmatpush.msra.mxu0 0.0
        %304 = vmatpush.msra.mxu0 0.0
        %305 = vmatpush.msra.mxu0 0.0
        %306 = vmatpush.msra.mxu0 %v281
        %307 = vmatpush.msra.mxu0 %v277
        %308 = vmatpush.msra.mxu0 %v273
        %309 = vmatpush.msra.mxu0 %v269
        %310 = vmatmul.f32.gmra.mxu0 %v289
        %v311 = vpop.f32.mrf.mxu0
        %v312 = vadd.f32 0.0, %v311
        %313 = vmatmul.f32.gmra.mxu0 %v292
        %v314 = vpop.f32.mrf.mxu0
        %v315 = vadd.f32 0.0, %v314
        %316 = vdwg.mxu0
        %v317 = vperm.slane %v285, 0
        %v318 = vadd.f32 %v312, %v317
        %v319 = vadd.f32 %v315, %v317
        %322 = vrot.lane.b32.xlu0 %v318, 120
        %v323 = vpop.permute.xlu0 %322
        %324 = vrot.lane.b32.xlu0 %v319, 120
        %v325 = vpop.permute.xlu0 %324
        %326 = vrot.lane.b32.xlu0 %v318, 112
        %v327 = vpop.permute.xlu0 %326
        %328 = vrot.lane.b32.xlu0 %v319, 112
        %v329 = vpop.permute.xlu0 %328
        %330 = vrot.lane.b32.xlu0 %v318, 104
        %v331 = vpop.permute.xlu0 %330
        %332 = vrot.lane.b32.xlu0 %v319, 104
        %v333 = vpop.permute.xlu0 %332
        %v334 = vperm.slane %v285, 1
        %336 = vrot.lane.b32.xlu0 %v334, 32
        %v337 = vpop.permute.xlu0 %336
        %v339 = vadd.f32 %v312, %v337
        %v340 = vadd.f32 %v315, %v337
        %343 = vrot.lane.b32.xlu0 %v339, 120
        %v344 = vpop.permute.xlu0 %343
        %345 = vrot.lane.b32.xlu0 %v340, 120
        %v346 = vpop.permute.xlu0 %345
        %347 = vrot.lane.b32.xlu0 %v339, 112
        %v348 = vpop.permute.xlu0 %347
        %349 = vrot.lane.b32.xlu0 %v340, 112
        %v350 = vpop.permute.xlu0 %349
        %351 = vrot.lane.b32.xlu0 %v339, 104
        %v352 = vpop.permute.xlu0 %351
        %353 = vrot.lane.b32.xlu0 %v340, 104
        %v354 = vpop.permute.xlu0 %353
        %v355 = vperm.slane %v285, 2
        %357 = vrot.lane.b32.xlu0 %v355, 64
        %v358 = vpop.permute.xlu0 %357
        %v360 = vadd.f32 %v312, %v358
        %v361 = vadd.f32 %v315, %v358
        %364 = vrot.lane.b32.xlu0 %v360, 120
        %v365 = vpop.permute.xlu0 %364
        %366 = vrot.lane.b32.xlu0 %v361, 120
        %v367 = vpop.permute.xlu0 %366
        %368 = vrot.lane.b32.xlu0 %v360, 112
        %v369 = vpop.permute.xlu0 %368
        %370 = vrot.lane.b32.xlu0 %v361, 112
        %v371 = vpop.permute.xlu0 %370
        %372 = vrot.lane.b32.xlu0 %v360, 104
        %v373 = vpop.permute.xlu0 %372
        %374 = vrot.lane.b32.xlu0 %v361, 104
        %v375 = vpop.permute.xlu0 %374
        %376 = vrot.lane.b32.xlu0 %v339, 96
        %v377 = vpop.permute.xlu0 %376
        %378 = vrot.lane.b32.xlu0 %v340, 96
        %v379 = vpop.permute.xlu0 %378
        %vm380 = vcmask 64512
        %v381 = vsel %vm380, %v318, 0
        %v383 = vsel %vm380, %v319, 0
        %v385 = vsel %vm380, %v377, 0
        %v387 = vsel %vm380, %v379, 0
        %389 = vmatpush.xpose.msra.mxu0 0.0
        %390 = vmatpush.xpose.msra.mxu0 0.0
        %391 = vmatpush.xpose.msra.mxu0 0.0
        %392 = vmatpush.xpose.msra.mxu0 0.0
        %393 = vmatpush.xpose.msra.mxu0 0.0
        %394 = vmatpush.xpose.msra.mxu0 0.0
        %395 = vmatpush.xpose.msra.mxu0 0.0
        %396 = vmatpush.xpose.msra.mxu0 0.0
        %397 = vmatpush.xpose.msra.mxu0 0.0
        %398 = vmatpush.xpose.msra.mxu0 0.0
        %399 = vmatpush.xpose.msra.mxu0 0.0
        %400 = vmatpush.xpose.msra.mxu0 0.0
        %401 = vmatpush.xpose.msra.mxu0 0.0
        %402 = vmatpush.xpose.msra.mxu0 0.0
        %403 = vmatpush.xpose.msra.mxu0 %v387
        %404 = vmatpush.xpose.msra.mxu0 %v385
        %405 = vmatmul.f32.gmra.mxu0 %v381
        %v406 = vpop.f32.mrf.mxu0
        %v407 = vadd.f32 0.0, %v406
        %408 = vmatmul.f32.gmra.mxu0 %v383
        %v409 = vpop.f32.mrf.mxu0
        %v410 = vadd.f32 0.0, %v409
        %411 = vdwg.mxu0
        %412 = vrot.lane.b32.xlu0 %v344, 96
        %v413 = vpop.permute.xlu0 %412
        %414 = vrot.lane.b32.xlu0 %v346, 96
        %v415 = vpop.permute.xlu0 %414
        %v416 = vsel %vm380, %v323, 0
        %v418 = vsel %vm380, %v325, 0
        %v420 = vsel %vm380, %v413, 0
        %v422 = vsel %vm380, %v415, 0
        %424 = vmatpush.xpose.msra.mxu0 0.0
        %425 = vmatpush.xpose.msra.mxu0 0.0
        %426 = vmatpush.xpose.msra.mxu0 0.0
        %427 = vmatpush.xpose.msra.mxu0 0.0
        %428 = vmatpush.xpose.msra.mxu0 0.0
        %429 = vmatpush.xpose.msra.mxu0 0.0
        %430 = vmatpush.xpose.msra.mxu0 0.0
        %431 = vmatpush.xpose.msra.mxu0 0.0
        %432 = vmatpush.xpose.msra.mxu0 0.0
        %433 = vmatpush.xpose.msra.mxu0 0.0
        %434 = vmatpush.xpose.msra.mxu0 0.0
        %435 = vmatpush.xpose.msra.mxu0 0.0
        %436 = vmatpush.xpose.msra.mxu0 0.0
        %437 = vmatpush.xpose.msra.mxu0 0.0
        %438 = vmatpush.xpose.msra.mxu0 %v422
        %439 = vmatpush.xpose.msra.mxu0 %v420
        %440 = vmatmul.f32.gmra.mxu0 %v416
        %v441 = vpop.f32.mrf.mxu0
        %v442 = vadd.f32 0.0, %v441
        %443 = vmatmul.f32.gmra.mxu0 %v418
        %v444 = vpop.f32.mrf.mxu0
        %v445 = vadd.f32 0.0, %v444
        %446 = vdwg.mxu0
        %447 = vrot.lane.b32.xlu0 %v348, 96
        %v448 = vpop.permute.xlu0 %447
        %449 = vrot.lane.b32.xlu0 %v350, 96
        %v450 = vpop.permute.xlu0 %449
        %v451 = vsel %vm380, %v327, 0
        %v453 = vsel %vm380, %v329, 0
        %v455 = vsel %vm380, %v448, 0
        %v457 = vsel %vm380, %v450, 0
        %459 = vmatpush.xpose.msra.mxu0 0.0
        %460 = vmatpush.xpose.msra.mxu0 0.0
        %461 = vmatpush.xpose.msra.mxu0 0.0
        %462 = vmatpush.xpose.msra.mxu0 0.0
        %463 = vmatpush.xpose.msra.mxu0 0.0
        %464 = vmatpush.xpose.msra.mxu0 0.0
        %465 = vmatpush.xpose.msra.mxu0 0.0
        %466 = vmatpush.xpose.msra.mxu0 0.0
        %467 = vmatpush.xpose.msra.mxu0 0.0
        %468 = vmatpush.xpose.msra.mxu0 0.0
        %469 = vmatpush.xpose.msra.mxu0 0.0
        %470 = vmatpush.xpose.msra.mxu0 0.0
        %471 = vmatpush.xpose.msra.mxu0 0.0
        %472 = vmatpush.xpose.msra.mxu0 0.0
        %473 = vmatpush.xpose.msra.mxu0 %v457
        %474 = vmatpush.xpose.msra.mxu0 %v455
        %475 = vmatmul.f32.gmra.mxu0 %v451
        %v476 = vpop.f32.mrf.mxu0
        %v477 = vadd.f32 0.0, %v476
        %478 = vmatmul.f32.gmra.mxu0 %v453
        %v479 = vpop.f32.mrf.mxu0
        %v480 = vadd.f32 0.0, %v479
        %481 = vdwg.mxu0
        %482 = vrot.lane.b32.xlu0 %v352, 96
        %v483 = vpop.permute.xlu0 %482
        %484 = vrot.lane.b32.xlu0 %v354, 96
        %v485 = vpop.permute.xlu0 %484
        %v486 = vsel %vm380, %v331, 0
        %v488 = vsel %vm380, %v333, 0
        %v490 = vsel %vm380, %v483, 0
        %v492 = vsel %vm380, %v485, 0
        %494 = vmatpush.xpose.msra.mxu0 0.0
        %495 = vmatpush.xpose.msra.mxu0 0.0
        %496 = vmatpush.xpose.msra.mxu0 0.0
        %497 = vmatpush.xpose.msra.mxu0 0.0
        %498 = vmatpush.xpose.msra.mxu0 0.0
        %499 = vmatpush.xpose.msra.mxu0 0.0
        %500 = vmatpush.xpose.msra.mxu0 0.0
        %501 = vmatpush.xpose.msra.mxu0 0.0
        %502 = vmatpush.xpose.msra.mxu0 0.0
        %503 = vmatpush.xpose.msra.mxu0 0.0
        %504 = vmatpush.xpose.msra.mxu0 0.0
        %505 = vmatpush.xpose.msra.mxu0 0.0
        %506 = vmatpush.xpose.msra.mxu0 0.0
        %507 = vmatpush.xpose.msra.mxu0 0.0
        %508 = vmatpush.xpose.msra.mxu0 %v492
        %509 = vmatpush.xpose.msra.mxu0 %v490
        %510 = vmatmul.f32.gmra.mxu0 %v486
        %v511 = vpop.f32.mrf.mxu0
        %v512 = vadd.f32 0.0, %v511
        %513 = vmatmul.f32.gmra.mxu0 %v488
        %v514 = vpop.f32.mrf.mxu0
        %v515 = vadd.f32 0.0, %v514
        %516 = vdwg.mxu0
        %v517 = vmul.f32 %v407, 0.35355338
        %v518 = vmul.f32 %v410, 0.35355338
        %v519 = vmul.f32 %v442, 0.35355338
        %v520 = vmul.f32 %v445, 0.35355338
        %v521 = vmul.f32 %v477, 0.35355338
        %v522 = vmul.f32 %v480, 0.35355338
        %v523 = vmul.f32 %v512, 0.35355338
        %v524 = vmul.f32 %v515, 0.35355338
        %vm525 = vcmask 130048
        %v526 = vsel %vm525, %v517, -inf
        %527 = vmax.xlane.f32.xlu0 %v526
        %v528 = vpop.xlane.xlu0 %527
        %v529 = vsel %vm525, %v518, -inf
        %530 = vmax.xlane.f32.xlu0 %v529
        %v531 = vpop.xlane.xlu0 %530
        %v532 = vsel %vm525, %v519, -inf
        %533 = vmax.xlane.f32.xlu0 %v532
        %v534 = vpop.xlane.xlu0 %533
        %v535 = vsel %vm525, %v520, -inf
        %536 = vmax.xlane.f32.xlu0 %v535
        %v537 = vpop.xlane.xlu0 %536
        %v538 = vsel %vm525, %v521, -inf
        %539 = vmax.xlane.f32.xlu0 %v538
        %v540 = vpop.xlane.xlu0 %539
        %v541 = vsel %vm525, %v522, -inf
        %542 = vmax.xlane.f32.xlu0 %v541
        %v543 = vpop.xlane.xlu0 %542
        %v544 = vsel %vm525, %v523, -inf
        %545 = vmax.xlane.f32.xlu0 %v544
        %v546 = vpop.xlane.xlu0 %545
        %v547 = vsel %vm525, %v524, -inf
        %548 = vmax.xlane.f32.xlu0 %v547
        %v549 = vpop.xlane.xlu0 %548
        %v550 = vsub.f32 %v517, %v528
        %v551 = vsub.f32 %v518, %v531
        %v552 = vsub.f32 %v519, %v534
        %v553 = vsub.f32 %v520, %v537
        %v554 = vsub.f32 %v521, %v540
        %v555 = vsub.f32 %v522, %v543
        %v556 = vsub.f32 %v523, %v546
        %v557 = vsub.f32 %v524, %v549
        %v558 = vmul.f32 %v550, 1.442695
        %v559 = vpow.pop %v558
        %v560 = vmul.f32 %v551, 1.442695
        %v561 = vpow.pop %v560
        %v562 = vmul.f32 %v552, 1.442695
        %v563 = vpow.pop %v562
        %v564 = vmul.f32 %v553, 1.442695
        %v565 = vpow.pop %v564
        %v566 = vmul.f32 %v554, 1.442695
        %v567 = vpow.pop %v566
        %v568 = vmul.f32 %v555, 1.442695
        %v569 = vpow.pop %v568
        %v570 = vmul.f32 %v556, 1.442695
        %v571 = vpow.pop %v570
        %v572 = vmul.f32 %v557, 1.442695
        %v573 = vpow.pop %v572
        %v574 = vsel %vm525, %v559, 0.0
        %575 = vadd.xlane.f32.xlu0 %v574
        %v576 = vpop.xlane.xlu0 %575
        %v577 = vsel %vm525, %v561, 0.0
        %578 = vadd.xlane.f32.xlu0 %v577
        %v579 = vpop.xlane.xlu0 %578
        %v580 = vsel %vm525, %v563, 0.0
        %581 = vadd.xlane.f32.xlu0 %v580
        %v582 = vpop.xlane.xlu0 %581
        %v583 = vsel %vm525, %v565, 0.0
        %584 = vadd.xlane.f32.xlu0 %v583
        %v585 = vpop.xlane.xlu0 %584
        %v586 = vsel %vm525, %v567, 0.0
        %587 = vadd.xlane.f32.xlu0 %v586
        %v588 = vpop.xlane.xlu0 %587
        %v589 = vsel %vm525, %v569, 0.0
        %590 = vadd.xlane.f32.xlu0 %v589
        %v591 = vpop.xlane.xlu0 %590
        %v592 = vsel %vm525, %v571, 0.0
        %593 = vadd.xlane.f32.xlu0 %v592
        %v594 = vpop.xlane.xlu0 %593
        %v595 = vsel %vm525, %v573, 0.0
        %596 = vadd.xlane.f32.xlu0 %v595
        %v597 = vpop.xlane.xlu0 %596
        %v598 = vrcp.pop %v576
        %v599 = vrcp.pop %v579
        %v600 = vrcp.pop %v582
        %v601 = vrcp.pop %v585
        %v602 = vrcp.pop %v588
        %v603 = vrcp.pop %v591
        %v604 = vrcp.pop %v594
        %v605 = vrcp.pop %v597
        %v606 = vmul.f32 %v559, %v598
        %v607 = vmul.f32 %v561, %v599
        %v608 = vmul.f32 %v563, %v600
        %v609 = vmul.f32 %v565, %v601
        %v610 = vmul.f32 %v567, %v602
        %v611 = vmul.f32 %v569, %v603
        %v612 = vmul.f32 %v571, %v604
        %v613 = vmul.f32 %v573, %v605
        %614 = vrot.lane.b32.xlu0 %v360, 64
        %v615 = vpop.permute.xlu0 %614
        %616 = vrot.lane.b32.xlu0 %v361, 64
        %v617 = vpop.permute.xlu0 %616
        %v621 = vsel %vm525, %v606, 0
        %v624 = vsel %vm525, %v607, 0
        %626 = vmatpush.msra.mxu0 0.0
        %627 = vmatpush.msra.mxu0 0.0
        %628 = vmatpush.msra.mxu0 0.0
        %629 = vmatpush.msra.mxu0 0.0
        %630 = vmatpush.msra.mxu0 0.0
        %631 = vmatpush.msra.mxu0 0.0
        %632 = vmatpush.msra.mxu0 0.0
        %633 = vmatpush.msra.mxu0 0.0
        %634 = vmatpush.msra.mxu0 0.0
        %635 = vmatpush.msra.mxu0 0.0
        %636 = vmatpush.msra.mxu0 0.0
        %637 = vmatpush.msra.mxu0 0.0
        %638 = vmatpush.msra.mxu0 0.0
        %639 = vmatpush.msra.mxu0 0.0
        %640 = vmatpush.msra.mxu0 %v617
        %641 = vmatpush.msra.mxu0 %v615
        %642 = vmatmul.f32.gmra.mxu0 %v621
        %v643 = vpop.f32.mrf.mxu0
        %v644 = vadd.f32 0.0, %v643
        %645 = vmatmul.f32.gmra.mxu0 %v624
        %v646 = vpop.f32.mrf.mxu0
        %v647 = vadd.f32 0.0, %v646
        %648 = vdwg.mxu0
        %649 = vrot.lane.b32.xlu0 %v365, 64
        %v650 = vpop.permute.xlu0 %649
        %651 = vrot.lane.b32.xlu0 %v367, 64
        %v652 = vpop.permute.xlu0 %651
        %v656 = vsel %vm525, %v608, 0
        %v659 = vsel %vm525, %v609, 0
        %661 = vmatpush.msra.mxu0 0.0
        %662 = vmatpush.msra.mxu0 0.0
        %663 = vmatpush.msra.mxu0 0.0
        %664 = vmatpush.msra.mxu0 0.0
        %665 = vmatpush.msra.mxu0 0.0
        %666 = vmatpush.msra.mxu0 0.0
        %667 = vmatpush.msra.mxu0 0.0
        %668 = vmatpush.msra.mxu0 0.0
        %669 = vmatpush.msra.mxu0 0.0
        %670 = vmatpush.msra.mxu0 0.0
        %671 = vmatpush.msra.mxu0 0.0
        %672 = vmatpush.msra.mxu0 0.0
        %673 = vmatpush.msra.mxu0 0.0
        %674 = vmatpush.msra.mxu0 0.0
        %675 = vmatpush.msra.mxu0 %v652
        %676 = vmatpush.msra.mxu0 %v650
        %677 = vmatmul.f32.gmra.mxu0 %v656
        %v678 = vpop.f32.mrf.mxu0
        %v679 = vadd.f32 0.0, %v678
        %680 = vmatmul.f32.gmra.mxu0 %v659
        %v681 = vpop.f32.mrf.mxu0
        %v682 = vadd.f32 0.0, %v681
        %683 = vdwg.mxu0
        %684 = vrot.lane.b32.xlu0 %v369, 64
        %v685 = vpop.permute.xlu0 %684
        %686 = vrot.lane.b32.xlu0 %v371, 64
        %v687 = vpop.permute.xlu0 %686
        %v691 = vsel %vm525, %v610, 0
        %v694 = vsel %vm525, %v611, 0
        %696 = vmatpush.msra.mxu0 0.0
        %697 = vmatpush.msra.mxu0 0.0
        %698 = vmatpush.msra.mxu0 0.0
        %699 = vmatpush.msra.mxu0 0.0
        %700 = vmatpush.msra.mxu0 0.0
        %701 = vmatpush.msra.mxu0 0.0
        %702 = vmatpush.msra.mxu0 0.0
        %703 = vmatpush.msra.mxu0 0.0
        %704 = vmatpush.msra.mxu0 0.0
        %705 = vmatpush.msra.mxu0 0.0
        %706 = vmatpush.msra.mxu0 0.0
        %707 = vmatpush.msra.mxu0 0.0
        %708 = vmatpush.msra.mxu0 0.0
        %709 = vmatpush.msra.mxu0 0.0
        %710 = vmatpush.msra.mxu0 %v687
        %711 = vmatpush.msra.mxu0 %v685
        %712 = vmatmul.f32.gmra.mxu0 %v691
        %v713 = vpop.f32.mrf.mxu0
        %v714 = vadd.f32 0.0, %v713
        %715 = vmatmul.f32.gmra.mxu0 %v694
        %v716 = vpop.f32.mrf.mxu0
        %v717 = vadd.f32 0.0, %v716
        %718 = vdwg.mxu0
        %719 = vrot.lane.b32.xlu0 %v373, 64
        %v720 = vpop.permute.xlu0 %719
        %721 = vrot.lane.b32.xlu0 %v375, 64
        %v722 = vpop.permute.xlu0 %721
        %v726 = vsel %vm525, %v612, 0
        %v729 = vsel %vm525, %v613, 0
        %731 = vmatpush.msra.mxu0 0.0
        %732 = vmatpush.msra.mxu0 0.0
        %733 = vmatpush.msra.mxu0 0.0
        %734 = vmatpush.msra.mxu0 0.0
        %735 = vmatpush.msra.mxu0 0.0
        %736 = vmatpush.msra.mxu0 0.0
        %737 = vmatpush.msra.mxu0 0.0
        %738 = vmatpush.msra.mxu0 0.0
        %739 = vmatpush.msra.mxu0 0.0
        %740 = vmatpush.msra.mxu0 0.0
        %741 = vmatpush.msra.mxu0 0.0
        %742 = vmatpush.msra.mxu0 0.0
        %743 = vmatpush.msra.mxu0 0.0
        %744 = vmatpush.msra.mxu0 0.0
        %745 = vmatpush.msra.mxu0 %v722
        %746 = vmatpush.msra.mxu0 %v720
        %747 = vmatmul.f32.gmra.mxu0 %v726
        %v748 = vpop.f32.mrf.mxu0
        %v749 = vadd.f32 0.0, %v748
        %750 = vmatmul.f32.gmra.mxu0 %v729
        %v751 = vpop.f32.mrf.mxu0
        %v752 = vadd.f32 0.0, %v751
        %753 = vdwg.mxu0
        %v755 = vsel %vm380, %v644, 0
        %v758 = vsel %vm380, %v647, 0
        %760 = vmatpush.msra.mxu0 0.0
        %761 = vmatpush.msra.mxu0 0.0
        %762 = vmatpush.msra.mxu0 0.0
        %763 = vmatpush.msra.mxu0 0.0
        %764 = vmatpush.msra.mxu0 0.0
        %765 = vmatpush.msra.mxu0 0.0
        %766 = vmatpush.msra.mxu0 0.0
        %767 = vmatpush.msra.mxu0 0.0
        %768 = vmatpush.msra.mxu0 0.0
        %769 = vmatpush.msra.mxu0 0.0
        %770 = vmatpush.msra.mxu0 0.0
        %771 = vmatpush.msra.mxu0 0.0
        %772 = vmatpush.msra.mxu0 0.0
        %773 = vmatpush.msra.mxu0 0.0
        %774 = vmatpush.msra.mxu0 0.0
        %775 = vmatpush.msra.mxu0 %v270
        %776 = vmatmul.f32.gmra.mxu0 %v755
        %v777 = vpop.f32.mrf.mxu0
        %v778 = vadd.f32 0.0, %v777
        %779 = vmatmul.f32.gmra.mxu0 %v758
        %v780 = vpop.f32.mrf.mxu0
        %v781 = vadd.f32 0.0, %v780
        %782 = vdwg.mxu0
        %v784 = vsel %vm380, %v679, 0
        %v787 = vsel %vm380, %v682, 0
        %789 = vmatpush.msra.mxu0 0.0
        %790 = vmatpush.msra.mxu0 0.0
        %791 = vmatpush.msra.mxu0 0.0
        %792 = vmatpush.msra.mxu0 0.0
        %793 = vmatpush.msra.mxu0 0.0
        %794 = vmatpush.msra.mxu0 0.0
        %795 = vmatpush.msra.mxu0 0.0
        %796 = vmatpush.msra.mxu0 0.0
        %797 = vmatpush.msra.mxu0 0.0
        %798 = vmatpush.msra.mxu0 0.0
        %799 = vmatpush.msra.mxu0 0.0
        %800 = vmatpush.msra.mxu0 0.0
        %801 = vmatpush.msra.mxu0 0.0
        %802 = vmatpush.msra.mxu0 0.0
        %803 = vmatpush.msra.mxu0 0.0
        %804 = vmatpush.msra.mxu0 %v274
        %805 = vmatmul.f32.gmra.mxu0 %v784
        %v806 = vpop.f32.mrf.mxu0
        %v807 = vadd.f32 0.0, %v806
        %808 = vmatmul.f32.gmra.mxu0 %v787
        %v809 = vpop.f32.mrf.mxu0
        %v810 = vadd.f32 0.0, %v809
        %811 = vdwg.mxu0
        %v813 = vsel %vm380, %v714, 0
        %v816 = vsel %vm380, %v717, 0
        %818 = vmatpush.msra.mxu0 0.0
        %819 = vmatpush.msra.mxu0 0.0
        %820 = vmatpush.msra.mxu0 0.0
        %821 = vmatpush.msra.mxu0 0.0
        %822 = vmatpush.msra.mxu0 0.0
        %823 = vmatpush.msra.mxu0 0.0
        %824 = vmatpush.msra.mxu0 0.0
        %825 = vmatpush.msra.mxu0 0.0
        %826 = vmatpush.msra.mxu0 0.0
        %827 = vmatpush.msra.mxu0 0.0
        %828 = vmatpush.msra.mxu0 0.0
        %829 = vmatpush.msra.mxu0 0.0
        %830 = vmatpush.msra.mxu0 0.0
        %831 = vmatpush.msra.mxu0 0.0
        %832 = vmatpush.msra.mxu0 0.0
        %833 = vmatpush.msra.mxu0 %v278
        %834 = vmatmul.f32.gmra.mxu0 %v813
        %v835 = vpop.f32.mrf.mxu0
        %v836 = vadd.f32 0.0, %v835
        %837 = vmatmul.f32.gmra.mxu0 %v816
        %v838 = vpop.f32.mrf.mxu0
        %v839 = vadd.f32 0.0, %v838
        %840 = vdwg.mxu0
        %v842 = vsel %vm380, %v749, 0
        %v845 = vsel %vm380, %v752, 0
        %847 = vmatpush.msra.mxu0 0.0
        %848 = vmatpush.msra.mxu0 0.0
        %849 = vmatpush.msra.mxu0 0.0
        %850 = vmatpush.msra.mxu0 0.0
        %851 = vmatpush.msra.mxu0 0.0
        %852 = vmatpush.msra.mxu0 0.0
        %853 = vmatpush.msra.mxu0 0.0
        %854 = vmatpush.msra.mxu0 0.0
        %855 = vmatpush.msra.mxu0 0.0
        %856 = vmatpush.msra.mxu0 0.0
        %857 = vmatpush.msra.mxu0 0.0
        %858 = vmatpush.msra.mxu0 0.0
        %859 = vmatpush.msra.mxu0 0.0
        %860 = vmatpush.msra.mxu0 0.0
        %861 = vmatpush.msra.mxu0 0.0
        %862 = vmatpush.msra.mxu0 %v282
        %863 = vmatmul.f32.gmra.mxu0 %v842
        %v864 = vpop.f32.mrf.mxu0
        %v865 = vadd.f32 0.0, %v864
        %866 = vmatmul.f32.gmra.mxu0 %v845
        %v867 = vpop.f32.mrf.mxu0
        %v868 = vadd.f32 0.0, %v867
        %869 = vdwg.mxu0
        %v870 = vsel %vm287, %v778, 0.0
        %v871 = vsel %vm287, %v807, 0.0
        %v872 = vadd.f32 %v870, %v871
        %v873 = vsel %vm287, %v836, 0.0
        %v874 = vadd.f32 %v872, %v873
        %v875 = vsel %vm287, %v865, 0.0
        %v876 = vadd.f32 %v874, %v875
        %v877 = vsel %vm287, %v781, 0.0
        %v878 = vsel %vm287, %v810, 0.0
        %v879 = vadd.f32 %v877, %v878
        %v880 = vsel %vm287, %v839, 0.0
        %v881 = vadd.f32 %v879, %v880
        %v882 = vsel %vm287, %v868, 0.0
        %v883 = vadd.f32 %v881, %v882
        %v884 = vperm.slane %v285, 3
        %v885 = vadd.f32 %v876, %v884
        %v886 = vadd.f32 %v883, %v884
        %v887 = vadd.f32 %v264, %v885
        %v888 = vadd.f32 %v267, %v886
        %v889 = vsel %vm287, %v887, 0.0
        %890 = vadd.xlane.f32.xlu0 %v889
        %v891 = vpop.xlane.xlu0 %890
        %v892 = vsel %vm287, %v888, 0.0
        %893 = vadd.xlane.f32.xlu0 %v892
        %v894 = vpop.xlane.xlu0 %893
        %v895 = vrcp.pop 32.0
        %v896 = vmul.f32 32.0, %v895
        %v897 = vsub.f32 1.0, %v896
        %v898 = vmul.f32 %v895, %v897
        %v899 = vadd.f32 %v895, %v898
        %vm900 = vweird.f32 %v895
        %v901 = vsel %vm900, %v895, %v899
        %v902 = vmul.f32 %v891, %v901
        %v903 = vmul.f32 %v894, %v901
        %v904 = vsub.f32 %v887, %v902
        %v905 = vsub.f32 %v888, %v903
        %v906 = vmul.f32 %v904, %v904
        %v907 = vmul.f32 %v905, %v905
        %v908 = vsel %vm287, %v906, 0.0
        %909 = vadd.xlane.f32.xlu0 %v908
        %v910 = vpop.xlane.xlu0 %909
        %v911 = vsel %vm287, %v907, 0.0
        %912 = vadd.xlane.f32.xlu0 %v911
        %v913 = vpop.xlane.xlu0 %912
        %v914 = vmul.f32 %v910, %v901
        %v915 = vmul.f32 %v913, %v901
        %v916 = vadd.f32 %v914, 1e-05
        %v917 = vadd.f32 %v915, 1e-05
        %v918 = vrsqrt.pop %v916
        %v919 = vmul.f32 %v918, %v916
        %v920 = vmul.f32 %v919, %v918
        %v921 = vmul.f32 0.5, %v920
        %v922 = vsub.f32 1.5, %v921
        %v923 = vmul.f32 %v918, %v922
        %vm924 = vweird.f32 %v916
        %vm925 = vweird.f32 %v918
        %vm926 = vmor %vm924, %vm925
        %v927 = vsel %vm926, %v918, %v923
        %v928 = vrsqrt.pop %v917
        %v929 = vmul.f32 %v928, %v917
        %v930 = vmul.f32 %v929, %v928
        %v931 = vmul.f32 0.5, %v930
        %v932 = vsub.f32 1.5, %v931
        %v933 = vmul.f32 %v928, %v932
        %vm934 = vweird.f32 %v917
        %vm935 = vweird.f32 %v928
        %vm936 = vmor %vm934, %vm935
        %v937 = vsel %vm936, %v928, %v933
        %v938 = vmul.f32 %v904, %v927
        %v939 = vmul.f32 %v905, %v937
        %v940 = vperm.slane %v285, 6
        %v941 = vmul.f32 %v938, %v940
        %v942 = vmul.f32 %v939, %v940
        %v943 = vperm.slane %v285, 7
        %v944 = vadd.f32 %v941, %v943
        %v945 = vadd.f32 %v942, %v943
        %v946 = vperm.slane %v285, 4
        %v948 = vsel %vm287, %v944, 0
        %v951 = vsel %vm287, %v945, 0
        %953 = vmatpush.msra.mxu0 0.0
        %954 = vmatpush.msra.mxu0 0.0
        %955 = vmatpush.msra.mxu0 0.0
        %956 = vmatpush.msra.mxu0 0.0
        %957 = vmatpush.msra.mxu0 0.0
        %958 = vmatpush.msra.mxu0 0.0
        %959 = vmatpush.msra.mxu0 0.0
        %960 = vmatpush.msra.mxu0 0.0
        %961 = vmatpush.msra.mxu0 0.0
        %962 = vmatpush.msra.mxu0 0.0
        %963 = vmatpush.msra.mxu0 0.0
        %964 = vmatpush.msra.mxu0 0.0
        %965 = vmatpush.msra.mxu0 %v283
        %966 = vmatpush.msra.mxu0 %v279
        %967 = vmatpush.msra.mxu0 %v275
        %968 = vmatpush.msra.mxu0 %v271
        %969 = vmatmul.f32.gmra.mxu0 %v948
        %v970 = vpop.f32.mrf.mxu0
        %v971 = vadd.f32 %v946, %v970
        %972 = vmatmul.f32.gmra.mxu0 %v951
        %v973 = vpop.f32.mrf.mxu0
        %v974 = vadd.f32 %v946, %v973
        %975 = vdwg.mxu0
        %v976 = vmax.f32 %v971, 0.0
        %v977 = vmax.f32 %v974, 0.0
        %v978 = vperm.slane %v285, 5
        %v980 = vsel %vm287, %v976, 0
        %v983 = vsel %vm287, %v977, 0
        %985 = vmatpush.msra.mxu0 0.0
        %986 = vmatpush.msra.mxu0 0.0
        %987 = vmatpush.msra.mxu0 0.0
        %988 = vmatpush.msra.mxu0 0.0
        %989 = vmatpush.msra.mxu0 0.0
        %990 = vmatpush.msra.mxu0 0.0
        %991 = vmatpush.msra.mxu0 0.0
        %992 = vmatpush.msra.mxu0 0.0
        %993 = vmatpush.msra.mxu0 0.0
        %994 = vmatpush.msra.mxu0 0.0
        %995 = vmatpush.msra.mxu0 0.0
        %996 = vmatpush.msra.mxu0 0.0
        %997 = vmatpush.msra.mxu0 %v284
        %998 = vmatpush.msra.mxu0 %v280
        %999 = vmatpush.msra.mxu0 %v276
        %1000 = vmatpush.msra.mxu0 %v272
        %1001 = vmatmul.f32.gmra.mxu0 %v980
        %v1002 = vpop.f32.mrf.mxu0
        %v1003 = vadd.f32 %v978, %v1002
        %1004 = vmatmul.f32.gmra.mxu0 %v983
        %v1005 = vpop.f32.mrf.mxu0
        %v1006 = vadd.f32 %v978, %v1005
        %1007 = vdwg.mxu0
        %v1008 = vadd.f32 %v944, %v1003
        %v1009 = vadd.f32 %v945, %v1006
        %v1010 = vsel %vm287, %v1008, 0.0
        %1011 = vadd.xlane.f32.xlu0 %v1010
        %v1012 = vpop.xlane.xlu0 %1011
        %v1013 = vsel %vm287, %v1009, 0.0
        %1014 = vadd.xlane.f32.xlu0 %v1013
        %v1015 = vpop.xlane.xlu0 %1014
        %v1016 = vmul.f32 %v1012, %v901
        %v1017 = vmul.f32 %v1015, %v901
        %v1018 = vsub.f32 %v1008, %v1016
        %v1019 = vsub.f32 %v1009, %v1017
        %v1020 = vmul.f32 %v1018, %v1018
        %v1021 = vmul.f32 %v1019, %v1019
        %v1022 = vsel %vm287, %v1020, 0.0
        %1023 = vadd.xlane.f32.xlu0 %v1022
        %v1024 = vpop.xlane.xlu0 %1023
        %v1025 = vsel %vm287, %v1021, 0.0
        %1026 = vadd.xlane.f32.xlu0 %v1025
        %v1027 = vpop.xlane.xlu0 %1026
        %v1028 = vmul.f32 %v1024, %v901
        %v1029 = vmul.f32 %v1027, %v901
        %v1030 = vadd.f32 %v1028, 1e-05
        %v1031 = vadd.f32 %v1029, 1e-05
        %v1032 = vrsqrt.pop %v1030
        %v1033 = vmul.f32 %v1032, %v1030
        %v1034 = vmul.f32 %v1033, %v1032
        %v1035 = vmul.f32 0.5, %v1034
        %v1036 = vsub.f32 1.5, %v1035
        %v1037 = vmul.f32 %v1032, %v1036
        %vm1038 = vweird.f32 %v1030
        %vm1039 = vweird.f32 %v1032
        %vm1040 = vmor %vm1038, %vm1039
        %v1041 = vsel %vm1040, %v1032, %v1037
        %v1042 = vrsqrt.pop %v1031
        %v1043 = vmul.f32 %v1042, %v1031
        %v1044 = vmul.f32 %v1043, %v1042
        %v1045 = vmul.f32 0.5, %v1044
        %v1046 = vsub.f32 1.5, %v1045
        %v1047 = vmul.f32 %v1042, %v1046
        %vm1048 = vweird.f32 %v1031
        %vm1049 = vweird.f32 %v1042
        %vm1050 = vmor %vm1048, %vm1049
        %v1051 = vsel %vm1050, %v1042, %v1047
        %v1052 = vmul.f32 %v1018, %v1041
        %v1053 = vmul.f32 %v1019, %v1051
        %v1054 = vperm.slane %v286, 0
        %v1055 = vmul.f32 %v1052, %v1054
        %v1056 = vmul.f32 %v1053, %v1054
        %v1057 = vperm.slane %v286, 1
        %v1058 = vadd.f32 %v1055, %v1057
        %v1059 = vadd.f32 %v1056, %v1057
        %s1060 = scalar_lea.vmem [#allocation2], 128
        %v1061 = vld [vmem:[%s1060] sm:$0xff]
        %v1062 = vld [vmem:[%s1060 + $0x8] sm:$0xff]
        %v1063 = vld [vmem:[%s1060 + $0x10] sm:$0xff]
        %v1064 = vld [vmem:[%s1060 + $0x18] sm:$0xff]
        %v1065 = vld [vmem:[%s1060 + $0x20] sm:$0xff]
        %v1066 = vld [vmem:[%s1060 + $0x28] sm:$0xff]
        %v1067 = vld [vmem:[%s1060 + $0x30] sm:$0xff]
        %v1068 = vld [vmem:[%s1060 + $0x38] sm:$0xff]
        %v1069 = vld [vmem:[%s1060 + $0x40] sm:$0xff]
        %v1070 = vld [vmem:[%s1060 + $0x48] sm:$0xff]
        %v1071 = vld [vmem:[%s1060 + $0x50] sm:$0xff]
        %v1072 = vld [vmem:[%s1060 + $0x58] sm:$0xff]
        %v1073 = vld [vmem:[%s1060 + $0x60] sm:$0xff]
        %v1074 = vld [vmem:[%s1060 + $0x68] sm:$0xff]
        %v1075 = vld [vmem:[%s1060 + $0x70] sm:$0xff]
        %v1076 = vld [vmem:[%s1060 + $0x78] sm:$0xff]
        %s1077 = scalar_lea.vmem %s1, 16
        %v1078 = vld [vmem:[%s1077] sm:$0xff]
        %v1079 = vld [vmem:[%s1077 + $0x8] sm:$0x3]
        %v1081 = vsel %vm287, %v1058, 0
        %v1084 = vsel %vm287, %v1059, 0
        %1086 = vmatpush.msra.mxu0 0.0
        %1087 = vmatpush.msra.mxu0 0.0
        %1088 = vmatpush.msra.mxu0 0.0
        %1089 = vmatpush.msra.mxu0 0.0
        %1090 = vmatpush.msra.mxu0 0.0
        %1091 = vmatpush.msra.mxu0 0.0
        %1092 = vmatpush.msra.mxu0 0.0
        %1093 = vmatpush.msra.mxu0 0.0
        %1094 = vmatpush.msra.mxu0 0.0
        %1095 = vmatpush.msra.mxu0 0.0
        %1096 = vmatpush.msra.mxu0 0.0
        %1097 = vmatpush.msra.mxu0 0.0
        %1098 = vmatpush.msra.mxu0 %v1073
        %1099 = vmatpush.msra.mxu0 %v1069
        %1100 = vmatpush.msra.mxu0 %v1065
        %1101 = vmatpush.msra.mxu0 %v1061
        %1102 = vmatmul.f32.gmra.mxu0 %v1081
        %v1103 = vpop.f32.mrf.mxu0
        %v1104 = vadd.f32 0.0, %v1103
        %1105 = vmatmul.f32.gmra.mxu0 %v1084
        %v1106 = vpop.f32.mrf.mxu0
        %v1107 = vadd.f32 0.0, %v1106
        %1108 = vdwg.mxu0
        %v1109 = vperm.slane %v1078, 0
        %v1110 = vadd.f32 %v1104, %v1109
        %v1111 = vadd.f32 %v1107, %v1109
        %1114 = vrot.lane.b32.xlu0 %v1110, 120
        %v1115 = vpop.permute.xlu0 %1114
        %1116 = vrot.lane.b32.xlu0 %v1111, 120
        %v1117 = vpop.permute.xlu0 %1116
        %1118 = vrot.lane.b32.xlu0 %v1110, 112
        %v1119 = vpop.permute.xlu0 %1118
        %1120 = vrot.lane.b32.xlu0 %v1111, 112
        %v1121 = vpop.permute.xlu0 %1120
        %1122 = vrot.lane.b32.xlu0 %v1110, 104
        %v1123 = vpop.permute.xlu0 %1122
        %1124 = vrot.lane.b32.xlu0 %v1111, 104
        %v1125 = vpop.permute.xlu0 %1124
        %v1126 = vperm.slane %v1078, 1
        %1128 = vrot.lane.b32.xlu0 %v1126, 32
        %v1129 = vpop.permute.xlu0 %1128
        %v1131 = vadd.f32 %v1104, %v1129
        %v1132 = vadd.f32 %v1107, %v1129
        %1135 = vrot.lane.b32.xlu0 %v1131, 120
        %v1136 = vpop.permute.xlu0 %1135
        %1137 = vrot.lane.b32.xlu0 %v1132, 120
        %v1138 = vpop.permute.xlu0 %1137
        %1139 = vrot.lane.b32.xlu0 %v1131, 112
        %v1140 = vpop.permute.xlu0 %1139
        %1141 = vrot.lane.b32.xlu0 %v1132, 112
        %v1142 = vpop.permute.xlu0 %1141
        %1143 = vrot.lane.b32.xlu0 %v1131, 104
        %v1144 = vpop.permute.xlu0 %1143
        %1145 = vrot.lane.b32.xlu0 %v1132, 104
        %v1146 = vpop.permute.xlu0 %1145
        %v1147 = vperm.slane %v1078, 2
        %1149 = vrot.lane.b32.xlu0 %v1147, 64
        %v1150 = vpop.permute.xlu0 %1149
        %v1152 = vadd.f32 %v1104, %v1150
        %v1153 = vadd.f32 %v1107, %v1150
        %1156 = vrot.lane.b32.xlu0 %v1152, 120
        %v1157 = vpop.permute.xlu0 %1156
        %1158 = vrot.lane.b32.xlu0 %v1153, 120
        %v1159 = vpop.permute.xlu0 %1158
        %1160 = vrot.lane.b32.xlu0 %v1152, 112
        %v1161 = vpop.permute.xlu0 %1160
        %1162 = vrot.lane.b32.xlu0 %v1153, 112
        %v1163 = vpop.permute.xlu0 %1162
        %1164 = vrot.lane.b32.xlu0 %v1152, 104
        %v1165 = vpop.permute.xlu0 %1164
        %1166 = vrot.lane.b32.xlu0 %v1153, 104
        %v1167 = vpop.permute.xlu0 %1166
        %1168 = vrot.lane.b32.xlu0 %v1131, 96
        %v1169 = vpop.permute.xlu0 %1168
        %1170 = vrot.lane.b32.xlu0 %v1132, 96
        %v1171 = vpop.permute.xlu0 %1170
        %v1172 = vsel %vm380, %v1110, 0
        %v1174 = vsel %vm380, %v1111, 0
        %v1176 = vsel %vm380, %v1169, 0
        %v1178 = vsel %vm380, %v1171, 0
        %1180 = vmatpush.xpose.msra.mxu0 0.0
        %1181 = vmatpush.xpose.msra.mxu0 0.0
        %1182 = vmatpush.xpose.msra.mxu0 0.0
        %1183 = vmatpush.xpose.msra.mxu0 0.0
        %1184 = vmatpush.xpose.msra.mxu0 0.0
        %1185 = vmatpush.xpose.msra.mxu0 0.0
        %1186 = vmatpush.xpose.msra.mxu0 0.0
        %1187 = vmatpush.xpose.msra.mxu0 0.0
        %1188 = vmatpush.xpose.msra.mxu0 0.0
        %1189 = vmatpush.xpose.msra.mxu0 0.0
        %1190 = vmatpush.xpose.msra.mxu0 0.0
        %1191 = vmatpush.xpose.msra.mxu0 0.0
        %1192 = vmatpush.xpose.msra.mxu0 0.0
        %1193 = vmatpush.xpose.msra.mxu0 0.0
        %1194 = vmatpush.xpose.msra.mxu0 %v1178
        %1195 = vmatpush.xpose.msra.mxu0 %v1176
        %1196 = vmatmul.f32.gmra.mxu0 %v1172
        %v1197 = vpop.f32.mrf.mxu0
        %v1198 = vadd.f32 0.0, %v1197
        %1199 = vmatmul.f32.gmra.mxu0 %v1174
        %v1200 = vpop.f32.mrf.mxu0
        %v1201 = vadd.f32 0.0, %v1200
        %1202 = vdwg.mxu0
        %1203 = vrot.lane.b32.xlu0 %v1136, 96
        %v1204 = vpop.permute.xlu0 %1203
        %1205 = vrot.lane.b32.xlu0 %v1138, 96
        %v1206 = vpop.permute.xlu0 %1205
        %v1207 = vsel %vm380, %v1115, 0
        %v1209 = vsel %vm380, %v1117, 0
        %v1211 = vsel %vm380, %v1204, 0
        %v1213 = vsel %vm380, %v1206, 0
        %1215 = vmatpush.xpose.msra.mxu0 0.0
        %1216 = vmatpush.xpose.msra.mxu0 0.0
        %1217 = vmatpush.xpose.msra.mxu0 0.0
        %1218 = vmatpush.xpose.msra.mxu0 0.0
        %1219 = vmatpush.xpose.msra.mxu0 0.0
        %1220 = vmatpush.xpose.msra.mxu0 0.0
        %1221 = vmatpush.xpose.msra.mxu0 0.0
        %1222 = vmatpush.xpose.msra.mxu0 0.0
        %1223 = vmatpush.xpose.msra.mxu0 0.0
        %1224 = vmatpush.xpose.msra.mxu0 0.0
        %1225 = vmatpush.xpose.msra.mxu0 0.0
        %1226 = vmatpush.xpose.msra.mxu0 0.0
        %1227 = vmatpush.xpose.msra.mxu0 0.0
        %1228 = vmatpush.xpose.msra.mxu0 0.0
        %1229 = vmatpush.xpose.msra.mxu0 %v1213
        %1230 = vmatpush.xpose.msra.mxu0 %v1211
        %1231 = vmatmul.f32.gmra.mxu0 %v1207
        %v1232 = vpop.f32.mrf.mxu0
        %v1233 = vadd.f32 0.0, %v1232
        %1234 = vmatmul.f32.gmra.mxu0 %v1209
        %v1235 = vpop.f32.mrf.mxu0
        %v1236 = vadd.f32 0.0, %v1235
        %1237 = vdwg.mxu0
        %1238 = vrot.lane.b32.xlu0 %v1140, 96
        %v1239 = vpop.permute.xlu0 %1238
        %1240 = vrot.lane.b32.xlu0 %v1142, 96
        %v1241 = vpop.permute.xlu0 %1240
        %v1242 = vsel %vm380, %v1119, 0
        %v1244 = vsel %vm380, %v1121, 0
        %v1246 = vsel %vm380, %v1239, 0
        %v1248 = vsel %vm380, %v1241, 0
        %1250 = vmatpush.xpose.msra.mxu0 0.0
        %1251 = vmatpush.xpose.msra.mxu0 0.0
        %1252 = vmatpush.xpose.msra.mxu0 0.0
        %1253 = vmatpush.xpose.msra.mxu0 0.0
        %1254 = vmatpush.xpose.msra.mxu0 0.0
        %1255 = vmatpush.xpose.msra.mxu0 0.0
        %1256 = vmatpush.xpose.msra.mxu0 0.0
        %1257 = vmatpush.xpose.msra.mxu0 0.0
        %1258 = vmatpush.xpose.msra.mxu0 0.0
        %1259 = vmatpush.xpose.msra.mxu0 0.0
        %1260 = vmatpush.xpose.msra.mxu0 0.0
        %1261 = vmatpush.xpose.msra.mxu0 0.0
        %1262 = vmatpush.xpose.msra.mxu0 0.0
        %1263 = vmatpush.xpose.msra.mxu0 0.0
        %1264 = vmatpush.xpose.msra.mxu0 %v1248
        %1265 = vmatpush.xpose.msra.mxu0 %v1246
        %1266 = vmatmul.f32.gmra.mxu0 %v1242
        %v1267 = vpop.f32.mrf.mxu0
        %v1268 = vadd.f32 0.0, %v1267
        %1269 = vmatmul.f32.gmra.mxu0 %v1244
        %v1270 = vpop.f32.mrf.mxu0
        %v1271 = vadd.f32 0.0, %v1270
        %1272 = vdwg.mxu0
        %1273 = vrot.lane.b32.xlu0 %v1144, 96
        %v1274 = vpop.permute.xlu0 %1273
        %1275 = vrot.lane.b32.xlu0 %v1146, 96
        %v1276 = vpop.permute.xlu0 %1275
        %v1277 = vsel %vm380, %v1123, 0
        %v1279 = vsel %vm380, %v1125, 0
        %v1281 = vsel %vm380, %v1274, 0
        %v1283 = vsel %vm380, %v1276, 0
        %1285 = vmatpush.xpose.msra.mxu0 0.0
        %1286 = vmatpush.xpose.msra.mxu0 0.0
        %1287 = vmatpush.xpose.msra.mxu0 0.0
        %1288 = vmatpush.xpose.msra.mxu0 0.0
        %1289 = vmatpush.xpose.msra.mxu0 0.0
        %1290 = vmatpush.xpose.msra.mxu0 0.0
        %1291 = vmatpush.xpose.msra.mxu0 0.0
        %1292 = vmatpush.xpose.msra.mxu0 0.0
        %1293 = vmatpush.xpose.msra.mxu0 0.0
        %1294 = vmatpush.xpose.msra.mxu0 0.0
        %1295 = vmatpush.xpose.msra.mxu0 0.0
        %1296 = vmatpush.xpose.msra.mxu0 0.0
        %1297 = vmatpush.xpose.msra.mxu0 0.0
        %1298 = vmatpush.xpose.msra.mxu0 0.0
        %1299 = vmatpush.xpose.msra.mxu0 %v1283
        %1300 = vmatpush.xpose.msra.mxu0 %v1281
        %1301 = vmatmul.f32.gmra.mxu0 %v1277
        %v1302 = vpop.f32.mrf.mxu0
        %v1303 = vadd.f32 0.0, %v1302
        %1304 = vmatmul.f32.gmra.mxu0 %v1279
        %v1305 = vpop.f32.mrf.mxu0
        %v1306 = vadd.f32 0.0, %v1305
        %1307 = vdwg.mxu0
        %v1308 = vmul.f32 %v1198, 0.35355338
        %v1309 = vmul.f32 %v1201, 0.35355338
        %v1310 = vmul.f32 %v1233, 0.35355338
        %v1311 = vmul.f32 %v1236, 0.35355338
        %v1312 = vmul.f32 %v1268, 0.35355338
        %v1313 = vmul.f32 %v1271, 0.35355338
        %v1314 = vmul.f32 %v1303, 0.35355338
        %v1315 = vmul.f32 %v1306, 0.35355338
        %v1316 = vsel %vm525, %v1308, -inf
        %1317 = vmax.xlane.f32.xlu0 %v1316
        %v1318 = vpop.xlane.xlu0 %1317
        %v1319 = vsel %vm525, %v1309, -inf
        %1320 = vmax.xlane.f32.xlu0 %v1319
        %v1321 = vpop.xlane.xlu0 %1320
        %v1322 = vsel %vm525, %v1310, -inf
        %1323 = vmax.xlane.f32.xlu0 %v1322
        %v1324 = vpop.xlane.xlu0 %1323
        %v1325 = vsel %vm525, %v1311, -inf
        %1326 = vmax.xlane.f32.xlu0 %v1325
        %v1327 = vpop.xlane.xlu0 %1326
        %v1328 = vsel %vm525, %v1312, -inf
        %1329 = vmax.xlane.f32.xlu0 %v1328
        %v1330 = vpop.xlane.xlu0 %1329
        %v1331 = vsel %vm525, %v1313, -inf
        %1332 = vmax.xlane.f32.xlu0 %v1331
        %v1333 = vpop.xlane.xlu0 %1332
        %v1334 = vsel %vm525, %v1314, -inf
        %1335 = vmax.xlane.f32.xlu0 %v1334
        %v1336 = vpop.xlane.xlu0 %1335
        %v1337 = vsel %vm525, %v1315, -inf
        %1338 = vmax.xlane.f32.xlu0 %v1337
        %v1339 = vpop.xlane.xlu0 %1338
        %v1340 = vsub.f32 %v1308, %v1318
        %v1341 = vsub.f32 %v1309, %v1321
        %v1342 = vsub.f32 %v1310, %v1324
        %v1343 = vsub.f32 %v1311, %v1327
        %v1344 = vsub.f32 %v1312, %v1330
        %v1345 = vsub.f32 %v1313, %v1333
        %v1346 = vsub.f32 %v1314, %v1336
        %v1347 = vsub.f32 %v1315, %v1339
        %v1348 = vmul.f32 %v1340, 1.442695
        %v1349 = vpow.pop %v1348
        %v1350 = vmul.f32 %v1341, 1.442695
        %v1351 = vpow.pop %v1350
        %v1352 = vmul.f32 %v1342, 1.442695
        %v1353 = vpow.pop %v1352
        %v1354 = vmul.f32 %v1343, 1.442695
        %v1355 = vpow.pop %v1354
        %v1356 = vmul.f32 %v1344, 1.442695
        %v1357 = vpow.pop %v1356
        %v1358 = vmul.f32 %v1345, 1.442695
        %v1359 = vpow.pop %v1358
        %v1360 = vmul.f32 %v1346, 1.442695
        %v1361 = vpow.pop %v1360
        %v1362 = vmul.f32 %v1347, 1.442695
        %v1363 = vpow.pop %v1362
        %v1364 = vsel %vm525, %v1349, 0.0
        %1365 = vadd.xlane.f32.xlu0 %v1364
        %v1366 = vpop.xlane.xlu0 %1365
        %v1367 = vsel %vm525, %v1351, 0.0
        %1368 = vadd.xlane.f32.xlu0 %v1367
        %v1369 = vpop.xlane.xlu0 %1368
        %v1370 = vsel %vm525, %v1353, 0.0
        %1371 = vadd.xlane.f32.xlu0 %v1370
        %v1372 = vpop.xlane.xlu0 %1371
        %v1373 = vsel %vm525, %v1355, 0.0
        %1374 = vadd.xlane.f32.xlu0 %v1373
        %v1375 = vpop.xlane.xlu0 %1374
        %v1376 = vsel %vm525, %v1357, 0.0
        %1377 = vadd.xlane.f32.xlu0 %v1376
        %v1378 = vpop.xlane.xlu0 %1377
        %v1379 = vsel %vm525, %v1359, 0.0
        %1380 = vadd.xlane.f32.xlu0 %v1379
        %v1381 = vpop.xlane.xlu0 %1380
        %v1382 = vsel %vm525, %v1361, 0.0
        %1383 = vadd.xlane.f32.xlu0 %v1382
        %v1384 = vpop.xlane.xlu0 %1383
        %v1385 = vsel %vm525, %v1363, 0.0
        %1386 = vadd.xlane.f32.xlu0 %v1385
        %v1387 = vpop.xlane.xlu0 %1386
        %v1388 = vrcp.pop %v1366
        %v1389 = vrcp.pop %v1369
        %v1390 = vrcp.pop %v1372
        %v1391 = vrcp.pop %v1375
        %v1392 = vrcp.pop %v1378
        %v1393 = vrcp.pop %v1381
        %v1394 = vrcp.pop %v1384
        %v1395 = vrcp.pop %v1387
        %v1396 = vmul.f32 %v1349, %v1388
        %v1397 = vmul.f32 %v1351, %v1389
        %v1398 = vmul.f32 %v1353, %v1390
        %v1399 = vmul.f32 %v1355, %v1391
        %v1400 = vmul.f32 %v1357, %v1392
        %v1401 = vmul.f32 %v1359, %v1393
        %v1402 = vmul.f32 %v1361, %v1394
        %v1403 = vmul.f32 %v1363, %v1395
        %1404 = vrot.lane.b32.xlu0 %v1152, 64
        %v1405 = vpop.permute.xlu0 %1404
        %1406 = vrot.lane.b32.xlu0 %v1153, 64
        %v1407 = vpop.permute.xlu0 %1406
        %v1411 = vsel %vm525, %v1396, 0
        %v1414 = vsel %vm525, %v1397, 0
        %1416 = vmatpush.msra.mxu0 0.0
        %1417 = vmatpush.msra.mxu0 0.0
        %1418 = vmatpush.msra.mxu0 0.0
        %1419 = vmatpush.msra.mxu0 0.0
        %1420 = vmatpush.msra.mxu0 0.0
        %1421 = vmatpush.msra.mxu0 0.0
        %1422 = vmatpush.msra.mxu0 0.0
        %1423 = vmatpush.msra.mxu0 0.0
        %1424 = vmatpush.msra.mxu0 0.0
        %1425 = vmatpush.msra.mxu0 0.0
        %1426 = vmatpush.msra.mxu0 0.0
        %1427 = vmatpush.msra.mxu0 0.0
        %1428 = vmatpush.msra.mxu0 0.0
        %1429 = vmatpush.msra.mxu0 0.0
        %1430 = vmatpush.msra.mxu0 %v1407
        %1431 = vmatpush.msra.mxu0 %v1405
        %1432 = vmatmul.f32.gmra.mxu0 %v1411
        %v1433 = vpop.f32.mrf.mxu0
        %v1434 = vadd.f32 0.0, %v1433
        %1435 = vmatmul.f32.gmra.mxu0 %v1414
        %v1436 = vpop.f32.mrf.mxu0
        %v1437 = vadd.f32 0.0, %v1436
        %1438 = vdwg.mxu0
        %1439 = vrot.lane.b32.xlu0 %v1157, 64
        %v1440 = vpop.permute.xlu0 %1439
        %1441 = vrot.lane.b32.xlu0 %v1159, 64
        %v1442 = vpop.permute.xlu0 %1441
        %v1446 = vsel %vm525, %v1398, 0
        %v1449 = vsel %vm525, %v1399, 0
        %1451 = vmatpush.msra.mxu0 0.0
        %1452 = vmatpush.msra.mxu0 0.0
        %1453 = vmatpush.msra.mxu0 0.0
        %1454 = vmatpush.msra.mxu0 0.0
        %1455 = vmatpush.msra.mxu0 0.0
        %1456 = vmatpush.msra.mxu0 0.0
        %1457 = vmatpush.msra.mxu0 0.0
        %1458 = vmatpush.msra.mxu0 0.0
        %1459 = vmatpush.msra.mxu0 0.0
        %1460 = vmatpush.msra.mxu0 0.0
        %1461 = vmatpush.msra.mxu0 0.0
        %1462 = vmatpush.msra.mxu0 0.0
        %1463 = vmatpush.msra.mxu0 0.0
        %1464 = vmatpush.msra.mxu0 0.0
        %1465 = vmatpush.msra.mxu0 %v1442
        %1466 = vmatpush.msra.mxu0 %v1440
        %1467 = vmatmul.f32.gmra.mxu0 %v1446
        %v1468 = vpop.f32.mrf.mxu0
        %v1469 = vadd.f32 0.0, %v1468
        %1470 = vmatmul.f32.gmra.mxu0 %v1449
        %v1471 = vpop.f32.mrf.mxu0
        %v1472 = vadd.f32 0.0, %v1471
        %1473 = vdwg.mxu0
        %1474 = vrot.lane.b32.xlu0 %v1161, 64
        %v1475 = vpop.permute.xlu0 %1474
        %1476 = vrot.lane.b32.xlu0 %v1163, 64
        %v1477 = vpop.permute.xlu0 %1476
        %v1481 = vsel %vm525, %v1400, 0
        %v1484 = vsel %vm525, %v1401, 0
        %1486 = vmatpush.msra.mxu0 0.0
        %1487 = vmatpush.msra.mxu0 0.0
        %1488 = vmatpush.msra.mxu0 0.0
        %1489 = vmatpush.msra.mxu0 0.0
        %1490 = vmatpush.msra.mxu0 0.0
        %1491 = vmatpush.msra.mxu0 0.0
        %1492 = vmatpush.msra.mxu0 0.0
        %1493 = vmatpush.msra.mxu0 0.0
        %1494 = vmatpush.msra.mxu0 0.0
        %1495 = vmatpush.msra.mxu0 0.0
        %1496 = vmatpush.msra.mxu0 0.0
        %1497 = vmatpush.msra.mxu0 0.0
        %1498 = vmatpush.msra.mxu0 0.0
        %1499 = vmatpush.msra.mxu0 0.0
        %1500 = vmatpush.msra.mxu0 %v1477
        %1501 = vmatpush.msra.mxu0 %v1475
        %1502 = vmatmul.f32.gmra.mxu0 %v1481
        %v1503 = vpop.f32.mrf.mxu0
        %v1504 = vadd.f32 0.0, %v1503
        %1505 = vmatmul.f32.gmra.mxu0 %v1484
        %v1506 = vpop.f32.mrf.mxu0
        %v1507 = vadd.f32 0.0, %v1506
        %1508 = vdwg.mxu0
        %1509 = vrot.lane.b32.xlu0 %v1165, 64
        %v1510 = vpop.permute.xlu0 %1509
        %1511 = vrot.lane.b32.xlu0 %v1167, 64
        %v1512 = vpop.permute.xlu0 %1511
        %v1516 = vsel %vm525, %v1402, 0
        %v1519 = vsel %vm525, %v1403, 0
        %1521 = vmatpush.msra.mxu0 0.0
        %1522 = vmatpush.msra.mxu0 0.0
        %1523 = vmatpush.msra.mxu0 0.0
        %1524 = vmatpush.msra.mxu0 0.0
        %1525 = vmatpush.msra.mxu0 0.0
        %1526 = vmatpush.msra.mxu0 0.0
        %1527 = vmatpush.msra.mxu0 0.0
        %1528 = vmatpush.msra.mxu0 0.0
        %1529 = vmatpush.msra.mxu0 0.0
        %1530 = vmatpush.msra.mxu0 0.0
        %1531 = vmatpush.msra.mxu0 0.0
        %1532 = vmatpush.msra.mxu0 0.0
        %1533 = vmatpush.msra.mxu0 0.0
        %1534 = vmatpush.msra.mxu0 0.0
        %1535 = vmatpush.msra.mxu0 %v1512
        %1536 = vmatpush.msra.mxu0 %v1510
        %1537 = vmatmul.f32.gmra.mxu0 %v1516
        %v1538 = vpop.f32.mrf.mxu0
        %v1539 = vadd.f32 0.0, %v1538
        %1540 = vmatmul.f32.gmra.mxu0 %v1519
        %v1541 = vpop.f32.mrf.mxu0
        %v1542 = vadd.f32 0.0, %v1541
        %1543 = vdwg.mxu0
        %v1545 = vsel %vm380, %v1434, 0
        %v1548 = vsel %vm380, %v1437, 0
        %1550 = vmatpush.msra.mxu0 0.0
        %1551 = vmatpush.msra.mxu0 0.0
        %1552 = vmatpush.msra.mxu0 0.0
        %1553 = vmatpush.msra.mxu0 0.0
        %1554 = vmatpush.msra.mxu0 0.0
        %1555 = vmatpush.msra.mxu0 0.0
        %1556 = vmatpush.msra.mxu0 0.0
        %1557 = vmatpush.msra.mxu0 0.0
        %1558 = vmatpush.msra.mxu0 0.0
        %1559 = vmatpush.msra.mxu0 0.0
        %1560 = vmatpush.msra.mxu0 0.0
        %1561 = vmatpush.msra.mxu0 0.0
        %1562 = vmatpush.msra.mxu0 0.0
        %1563 = vmatpush.msra.mxu0 0.0
        %1564 = vmatpush.msra.mxu0 0.0
        %1565 = vmatpush.msra.mxu0 %v1062
        %1566 = vmatmul.f32.gmra.mxu0 %v1545
        %v1567 = vpop.f32.mrf.mxu0
        %v1568 = vadd.f32 0.0, %v1567
        %1569 = vmatmul.f32.gmra.mxu0 %v1548
        %v1570 = vpop.f32.mrf.mxu0
        %v1571 = vadd.f32 0.0, %v1570
        %1572 = vdwg.mxu0
        %v1574 = vsel %vm380, %v1469, 0
        %v1577 = vsel %vm380, %v1472, 0
        %1579 = vmatpush.msra.mxu0 0.0
        %1580 = vmatpush.msra.mxu0 0.0
        %1581 = vmatpush.msra.mxu0 0.0
        %1582 = vmatpush.msra.mxu0 0.0
        %1583 = vmatpush.msra.mxu0 0.0
        %1584 = vmatpush.msra.mxu0 0.0
        %1585 = vmatpush.msra.mxu0 0.0
        %1586 = vmatpush.msra.mxu0 0.0
        %1587 = vmatpush.msra.mxu0 0.0
        %1588 = vmatpush.msra.mxu0 0.0
        %1589 = vmatpush.msra.mxu0 0.0
        %1590 = vmatpush.msra.mxu0 0.0
        %1591 = vmatpush.msra.mxu0 0.0
        %1592 = vmatpush.msra.mxu0 0.0
        %1593 = vmatpush.msra.mxu0 0.0
        %1594 = vmatpush.msra.mxu0 %v1066
        %1595 = vmatmul.f32.gmra.mxu0 %v1574
        %v1596 = vpop.f32.mrf.mxu0
        %v1597 = vadd.f32 0.0, %v1596
        %1598 = vmatmul.f32.gmra.mxu0 %v1577
        %v1599 = vpop.f32.mrf.mxu0
        %v1600 = vadd.f32 0.0, %v1599
        %1601 = vdwg.mxu0
        %v1603 = vsel %vm380, %v1504, 0
        %v1606 = vsel %vm380, %v1507, 0
        %1608 = vmatpush.msra.mxu0 0.0
        %1609 = vmatpush.msra.mxu0 0.0
        %1610 = vmatpush.msra.mxu0 0.0
        %1611 = vmatpush.msra.mxu0 0.0
        %1612 = vmatpush.msra.mxu0 0.0
        %1613 = vmatpush.msra.mxu0 0.0
        %1614 = vmatpush.msra.mxu0 0.0
        %1615 = vmatpush.msra.mxu0 0.0
        %1616 = vmatpush.msra.mxu0 0.0
        %1617 = vmatpush.msra.mxu0 0.0
        %1618 = vmatpush.msra.mxu0 0.0
        %1619 = vmatpush.msra.mxu0 0.0
        %1620 = vmatpush.msra.mxu0 0.0
        %1621 = vmatpush.msra.mxu0 0.0
        %1622 = vmatpush.msra.mxu0 0.0
        %1623 = vmatpush.msra.mxu0 %v1070
        %1624 = vmatmul.f32.gmra.mxu0 %v1603
        %v1625 = vpop.f32.mrf.mxu0
        %v1626 = vadd.f32 0.0, %v1625
        %1627 = vmatmul.f32.gmra.mxu0 %v1606
        %v1628 = vpop.f32.mrf.mxu0
        %v1629 = vadd.f32 0.0, %v1628
        %1630 = vdwg.mxu0
        %v1632 = vsel %vm380, %v1539, 0
        %v1635 = vsel %vm380, %v1542, 0
        %1637 = vmatpush.msra.mxu0 0.0
        %1638 = vmatpush.msra.mxu0 0.0
        %1639 = vmatpush.msra.mxu0 0.0
        %1640 = vmatpush.msra.mxu0 0.0
        %1641 = vmatpush.msra.mxu0 0.0
        %1642 = vmatpush.msra.mxu0 0.0
        %1643 = vmatpush.msra.mxu0 0.0
        %1644 = vmatpush.msra.mxu0 0.0
        %1645 = vmatpush.msra.mxu0 0.0
        %1646 = vmatpush.msra.mxu0 0.0
        %1647 = vmatpush.msra.mxu0 0.0
        %1648 = vmatpush.msra.mxu0 0.0
        %1649 = vmatpush.msra.mxu0 0.0
        %1650 = vmatpush.msra.mxu0 0.0
        %1651 = vmatpush.msra.mxu0 0.0
        %1652 = vmatpush.msra.mxu0 %v1074
        %1653 = vmatmul.f32.gmra.mxu0 %v1632
        %v1654 = vpop.f32.mrf.mxu0
        %v1655 = vadd.f32 0.0, %v1654
        %1656 = vmatmul.f32.gmra.mxu0 %v1635
        %v1657 = vpop.f32.mrf.mxu0
        %v1658 = vadd.f32 0.0, %v1657
        %1659 = vdwg.mxu0
        %v1660 = vsel %vm287, %v1568, 0.0
        %v1661 = vsel %vm287, %v1597, 0.0
        %v1662 = vadd.f32 %v1660, %v1661
        %v1663 = vsel %vm287, %v1626, 0.0
        %v1664 = vadd.f32 %v1662, %v1663
        %v1665 = vsel %vm287, %v1655, 0.0
        %v1666 = vadd.f32 %v1664, %v1665
        %v1667 = vsel %vm287, %v1571, 0.0
        %v1668 = vsel %vm287, %v1600, 0.0
        %v1669 = vadd.f32 %v1667, %v1668
        %v1670 = vsel %vm287, %v1629, 0.0
        %v1671 = vadd.f32 %v1669, %v1670
        %v1672 = vsel %vm287, %v1658, 0.0
        %v1673 = vadd.f32 %v1671, %v1672
        %v1674 = vperm.slane %v1078, 3
        %v1675 = vadd.f32 %v1666, %v1674
        %v1676 = vadd.f32 %v1673, %v1674
        %v1677 = vadd.f32 %v1058, %v1675
        %v1678 = vadd.f32 %v1059, %v1676
        %v1679 = vsel %vm287, %v1677, 0.0
        %1680 = vadd.xlane.f32.xlu0 %v1679
        %v1681 = vpop.xlane.xlu0 %1680
        %v1682 = vsel %vm287, %v1678, 0.0
        %1683 = vadd.xlane.f32.xlu0 %v1682
        %v1684 = vpop.xlane.xlu0 %1683
        %v1685 = vmul.f32 %v1681, %v901
        %v1686 = vmul.f32 %v1684, %v901
        %v1687 = vsub.f32 %v1677, %v1685
        %v1688 = vsub.f32 %v1678, %v1686
        %v1689 = vmul.f32 %v1687, %v1687
        %v1690 = vmul.f32 %v1688, %v1688
        %v1691 = vsel %vm287, %v1689, 0.0
        %1692 = vadd.xlane.f32.xlu0 %v1691
        %v1693 = vpop.xlane.xlu0 %1692
        %v1694 = vsel %vm287, %v1690, 0.0
        %1695 = vadd.xlane.f32.xlu0 %v1694
        %v1696 = vpop.xlane.xlu0 %1695
        %v1697 = vmul.f32 %v1693, %v901
        %v1698 = vmul.f32 %v1696, %v901
        %v1699 = vadd.f32 %v1697, 1e-05
        %v1700 = vadd.f32 %v1698, 1e-05
        %v1701 = vrsqrt.pop %v1699
        %v1702 = vmul.f32 %v1701, %v1699
        %v1703 = vmul.f32 %v1702, %v1701
        %v1704 = vmul.f32 0.5, %v1703
        %v1705 = vsub.f32 1.5, %v1704
        %v1706 = vmul.f32 %v1701, %v1705
        %vm1707 = vweird.f32 %v1699
        %vm1708 = vweird.f32 %v1701
        %vm1709 = vmor %vm1707, %vm1708
        %v1710 = vsel %vm1709, %v1701, %v1706
        %v1711 = vrsqrt.pop %v1700
        %v1712 = vmul.f32 %v1711, %v1700
        %v1713 = vmul.f32 %v1712, %v1711
        %v1714 = vmul.f32 0.5, %v1713
        %v1715 = vsub.f32 1.5, %v1714
        %v1716 = vmul.f32 %v1711, %v1715
        %vm1717 = vweird.f32 %v1700
        %vm1718 = vweird.f32 %v1711
        %vm1719 = vmor %vm1717, %vm1718
        %v1720 = vsel %vm1719, %v1711, %v1716
        %v1721 = vmul.f32 %v1687, %v1710
        %v1722 = vmul.f32 %v1688, %v1720
        %v1723 = vperm.slane %v1078, 6
        %v1724 = vmul.f32 %v1721, %v1723
        %v1725 = vmul.f32 %v1722, %v1723
        %v1726 = vperm.slane %v1078, 7
        %v1727 = vadd.f32 %v1724, %v1726
        %v1728 = vadd.f32 %v1725, %v1726
        %v1729 = vperm.slane %v1078, 4
        %v1731 = vsel %vm287, %v1727, 0
        %v1734 = vsel %vm287, %v1728, 0
        %1736 = vmatpush.msra.mxu0 0.0
        %1737 = vmatpush.msra.mxu0 0.0
        %1738 = vmatpush.msra.mxu0 0.0
        %1739 = vmatpush.msra.mxu0 0.0
        %1740 = vmatpush.msra.mxu0 0.0
        %1741 = vmatpush.msra.mxu0 0.0
        %1742 = vmatpush.msra.mxu0 0.0
        %1743 = vmatpush.msra.mxu0 0.0
        %1744 = vmatpush.msra.mxu0 0.0
        %1745 = vmatpush.msra.mxu0 0.0
        %1746 = vmatpush.msra.mxu0 0.0
        %1747 = vmatpush.msra.mxu0 0.0
        %1748 = vmatpush.msra.mxu0 %v1075
        %1749 = vmatpush.msra.mxu0 %v1071
        %1750 = vmatpush.msra.mxu0 %v1067
        %1751 = vmatpush.msra.mxu0 %v1063
        %1752 = vmatmul.f32.gmra.mxu0 %v1731
        %v1753 = vpop.f32.mrf.mxu0
        %v1754 = vadd.f32 %v1729, %v1753
        %1755 = vmatmul.f32.gmra.mxu0 %v1734
        %v1756 = vpop.f32.mrf.mxu0
        %v1757 = vadd.f32 %v1729, %v1756
        %1758 = vdwg.mxu0
        %v1759 = vmax.f32 %v1754, 0.0
        %v1760 = vmax.f32 %v1757, 0.0
        %v1761 = vperm.slane %v1078, 5
        %v1763 = vsel %vm287, %v1759, 0
        %v1766 = vsel %vm287, %v1760, 0
        %1768 = vmatpush.msra.mxu0 0.0
        %1769 = vmatpush.msra.mxu0 0.0
        %1770 = vmatpush.msra.mxu0 0.0
        %1771 = vmatpush.msra.mxu0 0.0
        %1772 = vmatpush.msra.mxu0 0.0
        %1773 = vmatpush.msra.mxu0 0.0
        %1774 = vmatpush.msra.mxu0 0.0
        %1775 = vmatpush.msra.mxu0 0.0
        %1776 = vmatpush.msra.mxu0 0.0
        %1777 = vmatpush.msra.mxu0 0.0
        %1778 = vmatpush.msra.mxu0 0.0
        %1779 = vmatpush.msra.mxu0 0.0
        %1780 = vmatpush.msra.mxu0 %v1076
        %1781 = vmatpush.msra.mxu0 %v1072
        %1782 = vmatpush.msra.mxu0 %v1068
        %1783 = vmatpush.msra.mxu0 %v1064
        %1784 = vmatmul.f32.gmra.mxu0 %v1763
        %v1785 = vpop.f32.mrf.mxu0
        %v1786 = vadd.f32 %v1761, %v1785
        %1787 = vmatmul.f32.gmra.mxu0 %v1766
        %v1788 = vpop.f32.mrf.mxu0
        %v1789 = vadd.f32 %v1761, %v1788
        %1790 = vdwg.mxu0
        %v1791 = vadd.f32 %v1727, %v1786
        %v1792 = vadd.f32 %v1728, %v1789
        %v1793 = vsel %vm287, %v1791, 0.0
        %1794 = vadd.xlane.f32.xlu0 %v1793
        %v1795 = vpop.xlane.xlu0 %1794
        %v1796 = vsel %vm287, %v1792, 0.0
        %1797 = vadd.xlane.f32.xlu0 %v1796
        %v1798 = vpop.xlane.xlu0 %1797
        %v1799 = vmul.f32 %v1795, %v901
        %v1800 = vmul.f32 %v1798, %v901
        %v1801 = vsub.f32 %v1791, %v1799
        %v1802 = vsub.f32 %v1792, %v1800
        %v1803 = vmul.f32 %v1801, %v1801
        %v1804 = vmul.f32 %v1802, %v1802
        %v1805 = vsel %vm287, %v1803, 0.0
        %1806 = vadd.xlane.f32.xlu0 %v1805
        %v1807 = vpop.xlane.xlu0 %1806
        %v1808 = vsel %vm287, %v1804, 0.0
        %1809 = vadd.xlane.f32.xlu0 %v1808
        %v1810 = vpop.xlane.xlu0 %1809
        %v1811 = vmul.f32 %v1807, %v901
        %v1812 = vmul.f32 %v1810, %v901
        %v1813 = vadd.f32 %v1811, 1e-05
        %v1814 = vadd.f32 %v1812, 1e-05
        %v1815 = vrsqrt.pop %v1813
        %v1816 = vmul.f32 %v1815, %v1813
        %v1817 = vmul.f32 %v1816, %v1815
        %v1818 = vmul.f32 0.5, %v1817
        %v1819 = vsub.f32 1.5, %v1818
        %v1820 = vmul.f32 %v1815, %v1819
        %vm1821 = vweird.f32 %v1813
        %vm1822 = vweird.f32 %v1815
        %vm1823 = vmor %vm1821, %vm1822
        %v1824 = vsel %vm1823, %v1815, %v1820
        %v1825 = vrsqrt.pop %v1814
        %v1826 = vmul.f32 %v1825, %v1814
        %v1827 = vmul.f32 %v1826, %v1825
        %v1828 = vmul.f32 0.5, %v1827
        %v1829 = vsub.f32 1.5, %v1828
        %v1830 = vmul.f32 %v1825, %v1829
        %vm1831 = vweird.f32 %v1814
        %vm1832 = vweird.f32 %v1825
        %vm1833 = vmor %vm1831, %vm1832
        %v1834 = vsel %vm1833, %v1825, %v1830
        %v1835 = vmul.f32 %v1801, %v1824
        %v1836 = vmul.f32 %v1802, %v1834
        %v1837 = vperm.slane %v1079, 0
        %v1838 = vmul.f32 %v1835, %v1837
        %v1839 = vmul.f32 %v1836, %v1837
        %v1840 = vperm.slane %v1079, 1
        %v1841 = vadd.f32 %v1838, %v1840
        %v1842 = vadd.f32 %v1839, %v1840
        %v1843 = vld [vmem:[%s3 + $0x4] sm:$0x1]
        %v1844 = vld [vmem:[%s3 + $0x5] sm:$0x1]
        %v1845 = vsel %vm287, %v1841, 0.0
        %1846 = vadd.xlane.f32.xlu0 %v1845
        %v1847 = vpop.xlane.xlu0 %1846
        %v1848 = vsel %vm287, %v1842, 0.0
        %1849 = vadd.xlane.f32.xlu0 %v1848
        %v1850 = vpop.xlane.xlu0 %1849
        %v1851 = vmul.f32 %v1847, %v901
        %v1852 = vmul.f32 %v1850, %v901
        %v1853 = vsub.f32 %v1841, %v1851
        %v1854 = vsub.f32 %v1842, %v1852
        %v1855 = vmul.f32 %v1853, %v1853
        %v1856 = vmul.f32 %v1854, %v1854
        %v1857 = vsel %vm287, %v1855, 0.0
        %1858 = vadd.xlane.f32.xlu0 %v1857
        %v1859 = vpop.xlane.xlu0 %1858
        %v1860 = vsel %vm287, %v1856, 0.0
        %1861 = vadd.xlane.f32.xlu0 %v1860
        %v1862 = vpop.xlane.xlu0 %1861
        %v1863 = vmul.f32 %v1859, %v901
        %v1864 = vmul.f32 %v1862, %v901
        %v1865 = vadd.f32 %v1863, 1e-05
        %v1866 = vadd.f32 %v1864, 1e-05
        %v1867 = vrsqrt.pop %v1865
        %v1868 = vmul.f32 %v1867, %v1865
        %v1869 = vmul.f32 %v1868, %v1867
        %v1870 = vmul.f32 0.5, %v1869
        %v1871 = vsub.f32 1.5, %v1870
        %v1872 = vmul.f32 %v1867, %v1871
        %vm1873 = vweird.f32 %v1865
        %vm1874 = vweird.f32 %v1867
        %vm1875 = vmor %vm1873, %vm1874
        %v1876 = vsel %vm1875, %v1867, %v1872
        %v1877 = vrsqrt.pop %v1866
        %v1878 = vmul.f32 %v1877, %v1866
        %v1879 = vmul.f32 %v1878, %v1877
        %v1880 = vmul.f32 0.5, %v1879
        %v1881 = vsub.f32 1.5, %v1880
        %v1882 = vmul.f32 %v1877, %v1881
        %vm1883 = vweird.f32 %v1866
        %vm1884 = vweird.f32 %v1877
        %vm1885 = vmor %vm1883, %vm1884
        %v1886 = vsel %vm1885, %v1877, %v1882
        %v1887 = vmul.f32 %v1853, %v1876
        %v1888 = vmul.f32 %v1854, %v1886
        %v1889 = vperm.slane %v1843, 0
        %v1890 = vmul.f32 %v1887, %v1889
        %v1891 = vmul.f32 %v1888, %v1889
        %v1892 = vperm.slane %v1844, 0
        %v1893 = vadd.f32 %v1890, %v1892
        %v1894 = vadd.f32 %v1891, %v1892
        %v1895 = vld [vmem:[%s3 + $0x7] sm:$0xf]
        %v1896 = vld [vmem:[%s3 + $0x6] sm:$0x1]
        %v1897 = vperm.slane %v1896, 0
        %v1899 = vsel %vm287, %v1893, 0
        %v1902 = vsel %vm287, %v1894, 0
        %v1905 = vsel %vm287, %v1895, 0
        %1907 = vmatpush.xpose.msra.mxu0 0.0
        %1908 = vmatpush.xpose.msra.mxu0 0.0
        %1909 = vmatpush.xpose.msra.mxu0 0.0
        %1910 = vmatpush.xpose.msra.mxu0 0.0
        %1911 = vmatpush.xpose.msra.mxu0 0.0
        %1912 = vmatpush.xpose.msra.mxu0 0.0
        %1913 = vmatpush.xpose.msra.mxu0 0.0
        %1914 = vmatpush.xpose.msra.mxu0 0.0
        %1915 = vmatpush.xpose.msra.mxu0 0.0
        %1916 = vmatpush.xpose.msra.mxu0 0.0
        %1917 = vmatpush.xpose.msra.mxu0 0.0
        %1918 = vmatpush.xpose.msra.mxu0 0.0
        %1919 = vmatpush.xpose.msra.mxu0 0.0
        %1920 = vmatpush.xpose.msra.mxu0 0.0
        %1921 = vmatpush.xpose.msra.mxu0 0.0
        %1922 = vmatpush.xpose.msra.mxu0 %v1905
        %1923 = vmatmul.f32.gmra.mxu0 %v1899
        %v1924 = vpop.f32.mrf.mxu0
        %v1925 = vadd.f32 %v1897, %v1924
        %1926 = vmatmul.f32.gmra.mxu0 %v1902
        %v1927 = vpop.f32.mrf.mxu0
        %v1928 = vadd.f32 %v1897, %v1927
        %1929 = vdwg.mxu0
        %1930 = vst.msk [vmem:[%s216] sm:$0xff] %vm235, %v1925
        %1931 = vst.msk [vmem:[%s216 + $0x8] sm:$0xff] %vm235, %v1928
        %s1932 = smul.u32 2, %s16
        %p1933 = scmp.lt.s32.totalorder %s1932, 3
        %s1934 = scalar_select %p1933, %s1932, 3
        %s1935 = smul.addr %s1934, 8
        %s1936 = scalar_lea.vmem %s4, %s1935
        // Predicated region
        $region41: #{transformer_forward.1} parent=35 // pred_check
          %p1937 = pneg %p123
        $region42: #{transformer_forward.1} parent=35 // pred_check_branch
          %1939 = sbr.rel (%p1937) target = $region44
        $region43: #{transformer_forward.1} parent=35 // pred_region
          %s1940 = smul.u32 2, %s16
        $region44: #{transformer_forward.1} parent=35 // pred_fallthru
          _
      $region36: #{transformer_forward.1} parent=5 // pred_fallthru
        _
      %p1941 = scmp.le.s32.totalorder 2, %s11
      // Predicated region
      $region45: #{transformer_forward.1} parent=5 // pred_check
        %p1942 = pneg %p1941
      $region46: #{transformer_forward.1} parent=5 // pred_check_branch
        %1944 = sbr.rel (%p1942) target = $region48
      $region47: #{transformer_forward.1} parent=5 // pred_region
        %s1945 = ssub.s32 %s11, 2
        // Predicated region
        $region49: #{transformer_forward.1} parent=47 // pred_check
          %p1946 = pneg %p129
        $region50: #{transformer_forward.1} parent=47 // pred_check_branch
          %1948 = sbr.rel (%p1946) target = $region52
        $region51: #{transformer_forward.1} parent=47 // pred_region
          %s1949 = smul.u32 2, %s17
          %p1950 = scmp.lt.s32.totalorder %s1949, 3
          %s1951 = scalar_select %p1950, %s1949, 3
          %s1952 = smul.addr %s1951, 8
          %s1953 = scalar_lea.vmem %s4, %s1952
        $region52: #{transformer_forward.1} parent=47 // pred_fallthru
          _
      $region48: #{transformer_forward.1} parent=5 // pred_fallthru
        _
    $region6: #{transformer_forward.1} parent=1 // loop_footer
      %s15 = sadd.s32 1, %s11
    $region7: #{transformer_forward.1} parent=1 // loop_footer_branch
      %10 = sbr.rel target = $region3
    $region8: #{transformer_forward.1} parent=1 // loop_exit
      _
    %1954 = vsyncpa [#allocation3], 1
    %s1955 = scalar_lea.sflag [#allocation3], 1
    %1956 = vsyncpa %s1955, 1

</llo_original>
